<compile_context>
chip_gen: v6e
topology: v6e:2x2x1
jax: 0.10.0
libtpu: 0.0.40
codegen_flags: <defaults>
</compile_context>

<pallas_src>
import jax
import jax.numpy as jnp
from jax import lax
from jax.experimental import pallas as pl
from jax.experimental.pallas import tpu as pltpu

# ---------------- static (small) model configuration ----------------
B      = 2              # batch
C_EEG  = 8              # in_chans  (NCHW H axis)
T      = 320            # in_samples (NCHW W axis)
F1     = 4              # eegn_F1
D      = 2              # eegn_D
F2     = F1 * D         # 8
KL     = 16             # eegn_kernelSize (conv1 kernel along H)
K2     = 16             # ConvBlock conv2 kernel (fixed 16 in the module)
POOL1  = 8              # fixed first AvgPool2d(1, 8)
POOL2  = 8              # eegn_poolSize
TP     = T // POOL1     # 40
TC     = TP // POOL2    # 5
NW     = 3              # n_windows
L      = TC - NW + 1    # sliding-window length = 3
FT     = F2             # tcn_filters (== F1*D so residual `mid` is identity)
KT     = 5              # tcn_kernelSize
NC     = 4              # n_classes
EPS    = 1e-5           # BatchNorm eps
HIGH   = lax.Precision.HIGHEST    # host-side constant folding / reference only
LFT    = L * FT         # 24

# invariants the folded kernel relies on (would silently break otherwise)
assert F1 * D == FT, "TCN `mid` projection must be the identity"
assert T % POOL1 == 0 and TP % POOL2 == 0
assert L >= 1


# ---------------- packed constant slab layout (static) ----------------
_SLAB_PIECES = [
    ("p2wT", (L * B * NW, B * TP)),   # pool2 + sliding windows, block-diag over batch, transposed
    ("m1T",  (LFT, LFT)),             # TCN layer 1 block-Toeplitz (transposed, BN folded)
    ("m2T",  (LFT, LFT)),
    ("m3T",  (LFT, LFT)),
    ("m4T",  (LFT, FT)),              # layer 4 trimmed to the last time step only
    ("wc",   (F2, C_EEG)),            # conv1∘BN1∘depthwise∘BN2 folded affine
    ("bc",   (F2, 1)),
    ("w2c",  (F2, F2)),               # conv2 centre tap ∘ BN3
    ("b3c",  (F2, 1)),
    ("dwT",  (F2, NC)),               # dense head (transposed)
    ("bv1",  (1, LFT)),               # TCN bias rows (BN folded)
    ("bv2",  (1, LFT)),
    ("bv3",  (1, LFT)),
    ("bv4",  (1, FT)),
    ("db",   (1, NC)),
    ("aw",   (B, B * NW)),            # per-batch window-average matrix
]


def _make_slab_layout():
    off, r = {}, 0
    width = max(s[1] for _, s in _SLAB_PIECES)
    for name, s in _SLAB_PIECES:
        off[name] = (r, s)
        r += -(-s[0] // 8) * 8          # every piece starts at an 8-aligned sublane offset
    return off, (r, width)


_SLAB_OFF, _SLAB_SHAPE = _make_slab_layout()


def _elu(y):
    # overflow-safe ELU: exp only sees the non-positive branch
    return jnp.where(y > 0, y, jnp.exp(jnp.minimum(y, 0.0)) - 1.0)


# ================= fused ATCNet forward kernel (single invocation) =================
def atcnet_kernel(x_ref, pool1_ref, slab_ref, o_ref):
    def piece(name):
        r, (hh, ww) = _SLAB_OFF[name]
        return slab_ref[r:r + hh, 0:ww]

    wc, bc = piece("wc"), piece("bc")
    w2c, b3c = piece("w2c"), piece("b3c")
    pool1 = pool1_ref[...]                                               # (T, TP)

    # ---- ConvBlock (all BNs folded, eval-mode dropout = identity), per batch element ----
    zs = []
    for b in range(B):                                                   # static unroll, B=2
        y = jnp.dot(wc, x_ref[b], preferred_element_type=jnp.float32) + bc   # (F2, T)
        y = _elu(y)
        zs.append(jnp.dot(y, pool1, preferred_element_type=jnp.float32))     # (F2, TP)
    z = jnp.concatenate(zs, axis=1)                                      # (F2, B*TP)  lanes=(b,tp)
    h = _elu(jnp.dot(w2c, z, preferred_element_type=jnp.float32) + b3c)  # conv2+BN3+ELU

    # ---- pool2 + all NW sliding windows in one A@B^T matmul ----
    # xwT[(t,b,w), f] = sum_j pool2[j, w+t] * h[f, b*TP + j]
    xwT = lax.dot_general(piece("p2wT"), h, (((1,), (1,)), ((), ())),
                          preferred_element_type=jnp.float32)            # (L*B*NW, F2)
    vT = jnp.concatenate(
        [xwT[t * (B * NW):(t + 1) * (B * NW), :] for t in range(L)],
        axis=1)                                                          # (B*NW, L*FT)

    # ---- TCN block (row-vector form): each conv layer = one Toeplitz matmul, BN folded ----
    a = jnp.maximum(jnp.dot(vT, piece("m1T"), preferred_element_type=jnp.float32) + piece("bv1"), 0.0)
    a = jnp.maximum(jnp.dot(a, piece("m2T"), preferred_element_type=jnp.float32) + piece("bv2"), 0.0)
    a = jnp.maximum(a + vT, 0.0)                                         # residual (mid == identity)
    a = jnp.maximum(jnp.dot(a, piece("m3T"), preferred_element_type=jnp.float32) + piece("bv3"), 0.0)
    a = jnp.maximum(jnp.dot(a, piece("m4T"), preferred_element_type=jnp.float32) + piece("bv4"), 0.0)
    # a: (B*NW, FT) -- TCN output at the LAST time step of each window

    # ---- dense head on last step, fuse='average', softmax over classes ----
    tmp = jnp.dot(piece("aw"), a, preferred_element_type=jnp.float32)    # (B, FT)  window average
    logits = jnp.dot(tmp, piece("dwT"), preferred_element_type=jnp.float32) + piece("db")  # (B, NC)
    logits = logits - jnp.max(logits, axis=1, keepdims=True)
    e = jnp.exp(logits)
    o_ref[...] = e / jnp.sum(e, axis=1, keepdims=True)                   # (B, NC) written once


# ============================== parameters ==============================
def init_params(key):
    ks = list(jax.random.split(key, 48))
    idx = [0]

    def nrm(shape, s=0.1):
        k = ks[idx[0]]; idx[0] += 1
        return s * jax.random.normal(k, shape, jnp.float32)

    def bn(n):
        return (1.0 + nrm((n,)), nrm((n,)), nrm((n,), 0.05), 1.0 + jnp.abs(nrm((n,))))

    p = {}
    p["w1"] = nrm((F1, KL), 0.2)                        # Conv2d(1,F1,(KL,1))
    p["g1"], p["be1"], p["m1"], p["v1"] = bn(F1)
    p["wd"] = nrm((F2, C_EEG), 0.2)                     # depthwise Conv2d (F2,1,C,1)
    p["g2"], p["be2"], p["m2"], p["v2"] = bn(F2)
    p["w2"] = nrm((F2, F2, K2, 1), 0.2)                 # Conv2d(F2,F2,(16,1))
    p["g3"], p["be3"], p["m3"], p["v3"] = bn(F2)
    p["wt1"] = nrm((FT, FT, KT), 0.2); p["bt1"] = nrm((FT,))
    p["gt1"], p["bet1"], p["mt1"], p["vt1"] = bn(FT)
    p["wt2"] = nrm((FT, FT, KT), 0.2); p["bt2"] = nrm((FT,))
    p["gt2"], p["bet2"], p["mt2"], p["vt2"] = bn(FT)
    p["wt3"] = nrm((FT, FT, KT), 0.2)
    p["gt3"], p["bet3"], p["mt3"], p["vt3"] = bn(FT)
    p["wt4"] = nrm((FT, FT, KT), 0.2)
    p["gt4"], p["bet4"], p["mt4"], p["vt4"] = bn(FT)
    p["dw"] = nrm((NC, FT), 0.3); p["db"] = nrm((NC,))
    return p


def _bn_scale_bias(g, be, m, v):
    s = g / jnp.sqrt(v + EPS)
    return s, be - m * s


def _toeplitz_1d(w, dil, pad, lin):
    """Conv1d weight (Fo, Fi, K) -> (Lout*Fo, Lin*Fi) matrix acting on time-major
    flattened (time, channel) vectors; symmetric zero padding baked in."""
    fo, fi, kk = w.shape
    lout = lin + 2 * pad - (dil * (kk - 1) + 1) + 1
    t = jnp.arange(lout)[:, None]
    k = jnp.arange(kk)[None, :]
    s = t + k * dil - pad                                                # (Lout, K)
    onehot = (s[:, :, None] == jnp.arange(lin)[None, None, :]).astype(jnp.float32)
    m4 = jnp.einsum("oik,tks->tosi", w, onehot, precision=HIGH)          # (Lout,Fo,Lin,Fi)
    return m4.reshape(lout * fo, lin * fi), lout


def atcnet_prepare(p):
    """One-time (per parameter set) eval-mode constant folding. NOT traced inside the
    per-call forward. Returns (pool1, slab) device arrays consumed by the kernel."""
    # ---- ConvBlock: fold conv1 ∘ BN1 ∘ depthwise ∘ BN2 into one (F2, C_EEG) affine ----
    left1 = (KL - 1) // 2                               # PyTorch 'same' left pad
    hh = jnp.arange(C_EEG)[:, None]
    hp = jnp.arange(C_EEG)[None, :]
    kh = hp - hh + left1
    valid = (kh >= 0) & (kh < KL)
    band = jnp.where(valid[None, :, :], p["w1"][:, jnp.clip(kh, 0, KL - 1)], 0.0)
    w1_big = band.reshape(F1 * C_EEG, C_EEG)            # conv1 ('same' along H) as banded matrix

    s1, b1 = _bn_scale_bias(p["g1"], p["be1"], p["m1"], p["v1"])
    s1f = jnp.repeat(s1, C_EEG)
    b1f = jnp.repeat(b1, C_EEG)[:, None]

    f2i = jnp.arange(F2)[:, None]
    col = jnp.arange(F1 * C_EEG)[None, :]
    wd_exp = jnp.where((col // C_EEG) == (f2i // D),
                       p["wd"][f2i, col % C_EEG], 0.0)  # grouped depthwise conv as matrix

    s2, b2 = _bn_scale_bias(p["g2"], p["be2"], p["m2"], p["v2"])
    wc = s2[:, None] * jnp.dot(wd_exp * s1f[None, :], w1_big, precision=HIGH)
    bc = s2[:, None] * jnp.dot(wd_exp, b1f, precision=HIGH) + b2[:, None]

    # conv2 (16,1) 'same': depthwise kernel height == in_chans collapses H to exactly 1,
    # so only the centre tap of conv2 sees real data. Guard that assumption explicitly.
    assert p["wd"].shape == (F2, C_EEG), "depthwise must collapse the H axis to 1"
    s3, b3 = _bn_scale_bias(p["g3"], p["be3"], p["m3"], p["v3"])
    w2c = s3[:, None] * p["w2"][:, :, (K2 - 1) // 2, 0]
    b3c = b3[:, None]

    pool1 = (jnp.arange(T)[:, None] // POOL1 ==
             jnp.arange(TP)[None, :]).astype(jnp.float32) / POOL1        # (T, TP)
    pool2 = (jnp.arange(TP)[:, None] // POOL2 ==
             jnp.arange(TC)[None, :]).astype(jnp.float32) / POOL2        # (TP, TC)

    # pool2 + sliding-window extraction, block-diagonal over batch, transposed:
    #   p2wT[(t, b, w), b'*TP + j] = delta(b, b') * pool2[j, w + t]
    wt = jnp.arange(L)[:, None] + jnp.arange(NW)[None, :]                # (L, NW): w + t
    core = jnp.moveaxis(pool2[:, wt], 0, -1)                             # (L, NW, TP)
    p2wT = jnp.einsum("bc,twj->tbwcj", jnp.eye(B, dtype=jnp.float32), core,
                      precision=HIGH).reshape(L * B * NW, B * TP)

    # ---- TCN layers as block-Toeplitz matrices with BN folded into weights / bias ----
    def tcn_layer(w, conv_b, g, be, m, v, dil, pad):
        s, baff = _bn_scale_bias(g, be, m, v)
        mat, lout = _toeplitz_1d(w, dil, pad, L)
        assert lout == L                                # length preserved by 'same'-style padding
        mat = mat * jnp.tile(s, L)[:, None]             # BN scale per out-channel (time-major rows)
        bias = (s * conv_b + baff) if conv_b is not None else baff
        return mat, jnp.tile(bias, L)

    mat1, bias1 = tcn_layer(p["wt1"], p["bt1"], p["gt1"], p["bet1"], p["mt1"], p["vt1"], 1, KT // 2)
    mat2, bias2 = tcn_layer(p["wt2"], p["bt2"], p["gt2"], p["bet2"], p["mt2"], p["vt2"], 1, KT // 2)
    mat3, bias3 = tcn_layer(p["wt3"], None,     p["gt3"], p["bet3"], p["mt3"], p["vt3"], 2, 2 + KT // 2)
    mat4, bias4 = tcn_layer(p["wt4"], None,     p["gt4"], p["bet4"], p["mt4"], p["vt4"], 2, 2 + KT // 2)

    pieces = {
        "p2wT": p2wT,
        "m1T": mat1.T, "m2T": mat2.T, "m3T": mat3.T,
        "m4T": mat4[(L - 1) * FT:, :].T,                 # only the rows the head consumes
        "wc": wc, "bc": bc, "w2c": w2c, "b3c": b3c,
        "dwT": p["dw"].T,
        "bv1": bias1[None, :], "bv2": bias2[None, :], "bv3": bias3[None, :],
        "bv4": bias4[(L - 1) * FT:][None, :],
        "db": p["db"][None, :],
        "aw": jnp.kron(jnp.eye(B, dtype=jnp.float32), jnp.full((1, NW), 1.0 / NW, jnp.float32)),
    }

    slab = jnp.zeros(_SLAB_SHAPE, jnp.float32)
    for name, (r, shp) in _SLAB_OFF.items():
        arr = pieces[name].astype(jnp.float32)
        assert arr.shape == shp, (name, arr.shape, shp)
        slab = slab.at[r:r + shp[0], 0:shp[1]].set(arr)
    return pool1, slab


# ============================ Pallas forward ============================
@jax.jit
def atcnet_forward_pallas(x, pool1, slab):
    x2 = x[:, 0, :, :].astype(jnp.float32)                               # (B, C_EEG, T)
    return pl.pallas_call(
        atcnet_kernel,
        out_shape=jax.ShapeDtypeStruct((B, NC), jnp.float32),
        grid=(1,),
        in_specs=[pl.BlockSpec((B, C_EEG, T), lambda i: (0, 0, 0)),
                  pl.BlockSpec((T, TP), lambda i: (0, 0)),
                  pl.BlockSpec(_SLAB_SHAPE, lambda i: (0, 0))],
        out_specs=pl.BlockSpec((B, NC), lambda i: (0, 0)),
        compiler_params=pltpu.CompilerParams(
            dimension_semantics=("arbitrary",)),
    )(x2, pool1, slab)


# ============================ pure-JAX reference ============================
def _bn_ref(x, g, b, m, v, axis):
    sh = [1] * x.ndim
    sh[axis] = -1
    return (x - m.reshape(sh)) / jnp.sqrt(v.reshape(sh) + EPS) * g.reshape(sh) + b.reshape(sh)


def atcnet_forward_ref(x, p):
    xx = x.astype(jnp.float32)
    lp1 = (KL - 1) // 2
    y = lax.conv_general_dilated(xx, p["w1"][:, None, :, None], (1, 1),
                                 padding=((lp1, KL - 1 - lp1), (0, 0)),
                                 dimension_numbers=("NCHW", "OIHW", "NCHW"),
                                 precision=HIGH)
    y = _bn_ref(y, p["g1"], p["be1"], p["m1"], p["v1"], 1)
    y = lax.conv_general_dilated(y, p["wd"][:, None, :, None], (1, 1),
                                 padding=((0, 0), (0, 0)),
                                 dimension_numbers=("NCHW", "OIHW", "NCHW"),
                                 feature_group_count=F1, precision=HIGH)
    y = _bn_ref(y, p["g2"], p["be2"], p["m2"], p["v2"], 1)
    y = _elu(y)
    b_, c_, h_, w_ = y.shape
    y = y[..., :(w_ // POOL1) * POOL1].reshape(b_, c_, h_, w_ // POOL1, POOL1).mean(-1)
    lp2 = (K2 - 1) // 2
    y = lax.conv_general_dilated(y, p["w2"], (1, 1),
                                 padding=((lp2, K2 - 1 - lp2), (0, 0)),
                                 dimension_numbers=("NCHW", "OIHW", "NCHW"),
                                 precision=HIGH)
    y = _bn_ref(y, p["g3"], p["be3"], p["m3"], p["v3"], 1)
    y = _elu(y)
    b_, c_, h_, w_ = y.shape
    y = y[..., :(w_ // POOL2) * POOL2].reshape(b_, c_, h_, w_ // POOL2, POOL2).mean(-1)
    xl = y[:, :, -1, :]

    def conv1d(h, w, b, dil, pad):
        o = lax.conv_general_dilated(h, w, (1,), padding=((pad, pad),),
                                     rhs_dilation=(dil,),
                                     dimension_numbers=("NCH", "OIH", "NCH"),
                                     precision=HIGH)
        return o if b is None else o + b[None, :, None]

    def tcn(h):
        h0 = h
        z = conv1d(h, p["wt1"], p["bt1"], 1, KT // 2)
        z = _bn_ref(z, p["gt1"], p["bet1"], p["mt1"], p["vt1"], 1)
        z = jnp.maximum(z, 0.0)
        z = conv1d(z, p["wt2"], p["bt2"], 1, KT // 2)
        z = _bn_ref(z, p["gt2"], p["bet2"], p["mt2"], p["vt2"], 1)
        z = jnp.maximum(z, 0.0)
        z = z + h0
        z = jnp.maximum(z, 0.0)
        z = conv1d(z, p["wt3"], None, 2, 2 + KT // 2)
        z = _bn_ref(z, p["gt3"], p["bet3"], p["mt3"], p["vt3"], 1)
        z = jnp.maximum(z, 0.0)
        z = conv1d(z, p["wt4"], None, 2, 2 + KT // 2)
        z = _bn_ref(z, p["gt4"], p["bet4"], p["mt4"], p["vt4"], 1)
        z = jnp.maximum(z, 0.0)
        return z

    outs = []
    for st in range(NW):
        end = xl.shape[2] - NW + st + 1
        blk = tcn(xl[:, :, st:end])
        outs.append(jnp.dot(blk[:, :, -1], p["dw"].T, precision=HIGH) + p["db"])
    avg = jnp.mean(jnp.stack(outs), axis=0)
    return jax.nn.softmax(avg, axis=1)


# ================================ main ================================
if __name__ == "__main__":
    key = jax.random.PRNGKey(0)
    kx, kp = jax.random.split(key)
    x = jax.random.normal(kx, (B, 1, C_EEG, T), jnp.float32)            # NCHW, like PyTorch
    params = init_params(kp)

    # one-time constant folding (eval-mode BN stats); NOT part of the per-call forward path
    pool1, slab = jax.block_until_ready(atcnet_prepare(params))

    out = jax.block_until_ready(atcnet_forward_pallas(x, pool1, slab))
    ref = jax.block_until_ready(atcnet_forward_ref(x, params))

    assert out.shape == (B, NC)
    assert bool(jnp.all(jnp.isfinite(out)))
    assert bool(jnp.allclose(jnp.sum(out, axis=1), 1.0, atol=1e-4))
    # kernel uses default (f32-accumulate) MXU precision vs. HIGHEST-precision reference
    assert bool(jnp.allclose(out, ref, rtol=5e-3, atol=5e-3)), (out, ref)
    print("KERNEL_OK")
</pallas_src>

<mosaic_0001>
module attributes {stable_mosaic.version = 11 : i64} {
  func.func @atcnet_kernel(%arg0: i32, %arg1: memref<2x8x320xf32, #tpu.memory_space<vmem>>, %arg2: memref<320x40xf32, #tpu.memory_space<vmem>>, %arg3: memref<208x80xf32, #tpu.memory_space<vmem>>, %arg4: memref<2x4xf32, #tpu.memory_space<vmem>>) attributes {dimension_semantics = [#tpu.dimension_semantics<arbitrary>], iteration_bounds = array<i64: 1>, scalar_prefetch = 0 : i64, scratch_operands = 0 : i64, tpu.core_type = #tpu.core_type<tc>, window_params = [{pipeline_mode = #tpu.pipeline_mode<synchronous>, transform_indices = @transform_0, window_bounds = array<i64: 2, 8, 320>}, {pipeline_mode = #tpu.pipeline_mode<synchronous>, transform_indices = @transform_1, window_bounds = array<i64: 320, 40>}, {pipeline_mode = #tpu.pipeline_mode<synchronous>, transform_indices = @transform_2, window_bounds = array<i64: 208, 80>}, {pipeline_mode = #tpu.pipeline_mode<synchronous>, transform_indices = @transform_3, window_bounds = array<i64: 2, 4>}]} {
    %c120 = arith.constant 120 : index
    %c0 = arith.constant 0 : index
    %0 = vector.load %arg3[%c120, %c0] : memref<208x80xf32, #tpu.memory_space<vmem>>, vector<8x8xf32>
    %c128 = arith.constant 128 : index
    %c0_0 = arith.constant 0 : index
    %1 = vector.load %arg3[%c128, %c0_0] : memref<208x80xf32, #tpu.memory_space<vmem>>, vector<8x1xf32>
    %c136 = arith.constant 136 : index
    %c0_1 = arith.constant 0 : index
    %2 = vector.load %arg3[%c136, %c0_1] : memref<208x80xf32, #tpu.memory_space<vmem>>, vector<8x8xf32>
    %c144 = arith.constant 144 : index
    %c0_2 = arith.constant 0 : index
    %3 = vector.load %arg3[%c144, %c0_2] : memref<208x80xf32, #tpu.memory_space<vmem>>, vector<8x1xf32>
    %c0_3 = arith.constant 0 : index
    %c0_4 = arith.constant 0 : index
    %4 = vector.load %arg2[%c0_3, %c0_4] : memref<320x40xf32, #tpu.memory_space<vmem>>, vector<320x40xf32>
    %c0_5 = arith.constant 0 : index
    %c0_6 = arith.constant 0 : index
    %c0_7 = arith.constant 0 : index
    %5 = vector.load %arg1[%c0_5, %c0_6, %c0_7] : memref<2x8x320xf32, #tpu.memory_space<vmem>>, vector<1x8x320xf32>
    %6 = vector.shape_cast %5 : vector<1x8x320xf32> to vector<8x320xf32>
    %cst = arith.constant dense<0.000000e+00> : vector<8x320xf32>
    %7 = tpu.matmul %0, %6, %cst {dimension_numbers = #tpu.dot_dimension_numbers<[1], [0], [0], [1], [0, 0, 1, 1], [], []>} : vector<8x8xf32>, vector<8x320xf32>, vector<8x320xf32> -> vector<8x320xf32>
    %8 = vector.broadcast %1 : vector<8x1xf32> to vector<8x320xf32>
    %9 = arith.addf %7, %8 : vector<8x320xf32>
    %cst_8 = arith.constant 0.000000e+00 : f32
    %10 = vector.broadcast %cst_8 : f32 to vector<8x320xf32>
    %11 = arith.cmpf ogt, %9, %10 : vector<8x320xf32>
    %cst_9 = arith.constant 0.000000e+00 : f32
    %12 = vector.broadcast %cst_9 : f32 to vector<8x320xf32>
    %13 = arith.minimumf %9, %12 : vector<8x320xf32>
    %14 = math.exp %13 : vector<8x320xf32>
    %cst_10 = arith.constant 1.000000e+00 : f32
    %15 = vector.broadcast %cst_10 : f32 to vector<8x320xf32>
    %16 = arith.subf %14, %15 : vector<8x320xf32>
    %17 = arith.select %11, %9, %16 : vector<8x320xi1>, vector<8x320xf32>
    %cst_11 = arith.constant dense<0.000000e+00> : vector<8x40xf32>
    %18 = tpu.matmul %17, %4, %cst_11 {dimension_numbers = #tpu.dot_dimension_numbers<[1], [0], [0], [1], [0, 0, 1, 1], [], []>} : vector<8x320xf32>, vector<320x40xf32>, vector<8x40xf32> -> vector<8x40xf32>
    %c1 = arith.constant 1 : index
    %c0_12 = arith.constant 0 : index
    %c0_13 = arith.constant 0 : index
    %19 = vector.load %arg1[%c1, %c0_12, %c0_13] : memref<2x8x320xf32, #tpu.memory_space<vmem>>, vector<1x8x320xf32>
    %20 = vector.shape_cast %19 : vector<1x8x320xf32> to vector<8x320xf32>
    %cst_14 = arith.constant dense<0.000000e+00> : vector<8x320xf32>
    %21 = tpu.matmul %0, %20, %cst_14 {dimension_numbers = #tpu.dot_dimension_numbers<[1], [0], [0], [1], [0, 0, 1, 1], [], []>} : vector<8x8xf32>, vector<8x320xf32>, vector<8x320xf32> -> vector<8x320xf32>
    %22 = vector.broadcast %1 : vector<8x1xf32> to vector<8x320xf32>
    %23 = arith.addf %21, %22 : vector<8x320xf32>
    %cst_15 = arith.constant 0.000000e+00 : f32
    %24 = vector.broadcast %cst_15 : f32 to vector<8x320xf32>
    %25 = arith.cmpf ogt, %23, %24 : vector<8x320xf32>
    %cst_16 = arith.constant 0.000000e+00 : f32
    %26 = vector.broadcast %cst_16 : f32 to vector<8x320xf32>
    %27 = arith.minimumf %23, %26 : vector<8x320xf32>
    %28 = math.exp %27 : vector<8x320xf32>
    %cst_17 = arith.constant 1.000000e+00 : f32
    %29 = vector.broadcast %cst_17 : f32 to vector<8x320xf32>
    %30 = arith.subf %28, %29 : vector<8x320xf32>
    %31 = arith.select %25, %23, %30 : vector<8x320xi1>, vector<8x320xf32>
    %cst_18 = arith.constant dense<0.000000e+00> : vector<8x40xf32>
    %32 = tpu.matmul %31, %4, %cst_18 {dimension_numbers = #tpu.dot_dimension_numbers<[1], [0], [0], [1], [0, 0, 1, 1], [], []>} : vector<8x320xf32>, vector<320x40xf32>, vector<8x40xf32> -> vector<8x40xf32>
    %33 = tpu.concatenate %18, %32 in 1 : vector<8x40xf32>, vector<8x40xf32> -> vector<8x80xf32>
    %cst_19 = arith.constant dense<0.000000e+00> : vector<8x80xf32>
    %34 = tpu.matmul %2, %33, %cst_19 {dimension_numbers = #tpu.dot_dimension_numbers<[1], [0], [0], [1], [0, 0, 1, 1], [], []>} : vector<8x8xf32>, vector<8x80xf32>, vector<8x80xf32> -> vector<8x80xf32>
    %35 = vector.broadcast %3 : vector<8x1xf32> to vector<8x80xf32>
    %36 = arith.addf %34, %35 : vector<8x80xf32>
    %cst_20 = arith.constant 0.000000e+00 : f32
    %37 = vector.broadcast %cst_20 : f32 to vector<8x80xf32>
    %38 = arith.cmpf ogt, %36, %37 : vector<8x80xf32>
    %cst_21 = arith.constant 0.000000e+00 : f32
    %39 = vector.broadcast %cst_21 : f32 to vector<8x80xf32>
    %40 = arith.minimumf %36, %39 : vector<8x80xf32>
    %41 = math.exp %40 : vector<8x80xf32>
    %cst_22 = arith.constant 1.000000e+00 : f32
    %42 = vector.broadcast %cst_22 : f32 to vector<8x80xf32>
    %43 = arith.subf %41, %42 : vector<8x80xf32>
    %44 = arith.select %38, %36, %43 : vector<8x80xi1>, vector<8x80xf32>
    %c0_23 = arith.constant 0 : index
    %c0_24 = arith.constant 0 : index
    %45 = vector.load %arg3[%c0_23, %c0_24] : memref<208x80xf32, #tpu.memory_space<vmem>>, vector<18x80xf32>
    %cst_25 = arith.constant dense<0.000000e+00> : vector<18x8xf32>
    %46 = tpu.matmul %45, %44, %cst_25 {dimension_numbers = #tpu.dot_dimension_numbers<[1], [1], [0], [0], [0, 0, 1, 0], [], []>} : vector<18x80xf32>, vector<8x80xf32>, vector<18x8xf32> -> vector<18x8xf32>
    %47 = vector.extract_strided_slice %46 {offsets = [0, 0], sizes = [6, 8], strides = [1, 1]} : vector<18x8xf32> to vector<6x8xf32>
    %48 = vector.extract_strided_slice %46 {offsets = [6, 0], sizes = [6, 8], strides = [1, 1]} : vector<18x8xf32> to vector<6x8xf32>
    %49 = vector.extract_strided_slice %46 {offsets = [12, 0], sizes = [6, 8], strides = [1, 1]} : vector<18x8xf32> to vector<6x8xf32>
    %50 = tpu.concatenate %47, %48, %49 in 1 : vector<6x8xf32>, vector<6x8xf32>, vector<6x8xf32> -> vector<6x24xf32>
    %c24 = arith.constant 24 : index
    %c0_26 = arith.constant 0 : index
    %51 = vector.load %arg3[%c24, %c0_26] : memref<208x80xf32, #tpu.memory_space<vmem>>, vector<24x24xf32>
    %cst_27 = arith.constant dense<0.000000e+00> : vector<6x24xf32>
    %52 = tpu.matmul %50, %51, %cst_27 {dimension_numbers = #tpu.dot_dimension_numbers<[1], [0], [0], [1], [0, 0, 1, 1], [], []>} : vector<6x24xf32>, vector<24x24xf32>, vector<6x24xf32> -> vector<6x24xf32>
    %c160 = arith.constant 160 : index
    %c0_28 = arith.constant 0 : index
    %53 = vector.load %arg3[%c160, %c0_28] : memref<208x80xf32, #tpu.memory_space<vmem>>, vector<1x24xf32>
    %54 = vector.broadcast %53 : vector<1x24xf32> to vector<6x24xf32>
    %55 = arith.addf %52, %54 : vector<6x24xf32>
    %cst_29 = arith.constant 0.000000e+00 : f32
    %56 = vector.broadcast %cst_29 : f32 to vector<6x24xf32>
    %57 = arith.maximumf %55, %56 : vector<6x24xf32>
    %c48 = arith.constant 48 : index
    %c0_30 = arith.constant 0 : index
    %58 = vector.load %arg3[%c48, %c0_30] : memref<208x80xf32, #tpu.memory_space<vmem>>, vector<24x24xf32>
    %cst_31 = arith.constant dense<0.000000e+00> : vector<6x24xf32>
    %59 = tpu.matmul %57, %58, %cst_31 {dimension_numbers = #tpu.dot_dimension_numbers<[1], [0], [0], [1], [0, 0, 1, 1], [], []>} : vector<6x24xf32>, vector<24x24xf32>, vector<6x24xf32> -> vector<6x24xf32>
    %c168 = arith.constant 168 : index
    %c0_32 = arith.constant 0 : index
    %60 = vector.load %arg3[%c168, %c0_32] : memref<208x80xf32, #tpu.memory_space<vmem>>, vector<1x24xf32>
    %61 = vector.broadcast %60 : vector<1x24xf32> to vector<6x24xf32>
    %62 = arith.addf %59, %61 : vector<6x24xf32>
    %cst_33 = arith.constant 0.000000e+00 : f32
    %63 = vector.broadcast %cst_33 : f32 to vector<6x24xf32>
    %64 = arith.maximumf %62, %63 : vector<6x24xf32>
    %65 = arith.addf %64, %50 : vector<6x24xf32>
    %cst_34 = arith.constant 0.000000e+00 : f32
    %66 = vector.broadcast %cst_34 : f32 to vector<6x24xf32>
    %67 = arith.maximumf %65, %66 : vector<6x24xf32>
    %c72 = arith.constant 72 : index
    %c0_35 = arith.constant 0 : index
    %68 = vector.load %arg3[%c72, %c0_35] : memref<208x80xf32, #tpu.memory_space<vmem>>, vector<24x24xf32>
    %cst_36 = arith.constant dense<0.000000e+00> : vector<6x24xf32>
    %69 = tpu.matmul %67, %68, %cst_36 {dimension_numbers = #tpu.dot_dimension_numbers<[1], [0], [0], [1], [0, 0, 1, 1], [], []>} : vector<6x24xf32>, vector<24x24xf32>, vector<6x24xf32> -> vector<6x24xf32>
    %c176 = arith.constant 176 : index
    %c0_37 = arith.constant 0 : index
    %70 = vector.load %arg3[%c176, %c0_37] : memref<208x80xf32, #tpu.memory_space<vmem>>, vector<1x24xf32>
    %71 = vector.broadcast %70 : vector<1x24xf32> to vector<6x24xf32>
    %72 = arith.addf %69, %71 : vector<6x24xf32>
    %cst_38 = arith.constant 0.000000e+00 : f32
    %73 = vector.broadcast %cst_38 : f32 to vector<6x24xf32>
    %74 = arith.maximumf %72, %73 : vector<6x24xf32>
    %c96 = arith.constant 96 : index
    %c0_39 = arith.constant 0 : index
    %75 = vector.load %arg3[%c96, %c0_39] : memref<208x80xf32, #tpu.memory_space<vmem>>, vector<24x8xf32>
    %cst_40 = arith.constant dense<0.000000e+00> : vector<6x8xf32>
    %76 = tpu.matmul %74, %75, %cst_40 {dimension_numbers = #tpu.dot_dimension_numbers<[1], [0], [0], [1], [0, 0, 1, 1], [], []>} : vector<6x24xf32>, vector<24x8xf32>, vector<6x8xf32> -> vector<6x8xf32>
    %c184 = arith.constant 184 : index
    %c0_41 = arith.constant 0 : index
    %77 = vector.load %arg3[%c184, %c0_41] : memref<208x80xf32, #tpu.memory_space<vmem>>, vector<1x8xf32>
    %78 = vector.broadcast %77 : vector<1x8xf32> to vector<6x8xf32>
    %79 = arith.addf %76, %78 : vector<6x8xf32>
    %cst_42 = arith.constant 0.000000e+00 : f32
    %80 = vector.broadcast %cst_42 : f32 to vector<6x8xf32>
    %81 = arith.maximumf %79, %80 : vector<6x8xf32>
    %c200 = arith.constant 200 : index
    %c0_43 = arith.constant 0 : index
    %82 = vector.load %arg3[%c200, %c0_43] : memref<208x80xf32, #tpu.memory_space<vmem>>, vector<2x6xf32>
    %cst_44 = arith.constant dense<0.000000e+00> : vector<2x8xf32>
    %83 = tpu.matmul %82, %81, %cst_44 {dimension_numbers = #tpu.dot_dimension_numbers<[1], [0], [0], [1], [0, 0, 1, 1], [], []>} : vector<2x6xf32>, vector<6x8xf32>, vector<2x8xf32> -> vector<2x8xf32>
    %c152 = arith.constant 152 : index
    %c0_45 = arith.constant 0 : index
    %84 = vector.load %arg3[%c152, %c0_45] : memref<208x80xf32, #tpu.memory_space<vmem>>, vector<8x4xf32>
    %cst_46 = arith.constant dense<0.000000e+00> : vector<2x4xf32>
    %85 = tpu.matmul %83, %84, %cst_46 {dimension_numbers = #tpu.dot_dimension_numbers<[1], [0], [0], [1], [0, 0, 1, 1], [], []>} : vector<2x8xf32>, vector<8x4xf32>, vector<2x4xf32> -> vector<2x4xf32>
    %c192 = arith.constant 192 : index
    %c0_47 = arith.constant 0 : index
    %86 = vector.load %arg3[%c192, %c0_47] : memref<208x80xf32, #tpu.memory_space<vmem>>, vector<1x4xf32>
    %87 = vector.broadcast %86 : vector<1x4xf32> to vector<2x4xf32>
    %88 = arith.addf %85, %87 : vector<2x4xf32>
    %cst_48 = arith.constant dense<0xFF800000> : vector<2xf32>
    %89 = vector.multi_reduction <maximumf>, %88, %cst_48 [1] : vector<2x4xf32> to vector<2xf32>
    %90 = vector.shape_cast %89 : vector<2xf32> to vector<2x1xf32>
    %91 = vector.broadcast %90 : vector<2x1xf32> to vector<2x4xf32>
    %92 = arith.subf %88, %91 : vector<2x4xf32>
    %93 = math.exp %92 : vector<2x4xf32>
    %cst_49 = arith.constant dense<0.000000e+00> : vector<2xf32>
    %94 = vector.multi_reduction <add>, %93, %cst_49 [1] : vector<2x4xf32> to vector<2xf32>
    %95 = vector.shape_cast %94 : vector<2xf32> to vector<2x1xf32>
    %96 = vector.broadcast %95 : vector<2x1xf32> to vector<2x4xf32>
    %97 = arith.divf %93, %96 : vector<2x4xf32>
    %c0_50 = arith.constant 0 : index
    %c0_51 = arith.constant 0 : index
    %98 = vector.load %arg4[%c0_50, %c0_51] : memref<2x4xf32, #tpu.memory_space<vmem>>, vector<2x4xf32>
    tpu.vector_store %arg4[%c0_50, %c0_51], %97 {strides = array<i32>} : memref<2x4xf32, #tpu.memory_space<vmem>>, vector<2x4xf32>,
    return
  }
  func.func @transform_0(%arg0: i32) -> (i32, i32, i32) {
    %c0_i32 = arith.constant 0 : i32
    %c0_i32_0 = arith.constant 0 : i32
    %c0_i32_1 = arith.constant 0 : i32
    %c0_i32_2 = arith.constant 0 : i32
    return %c0_i32, %c0_i32_0, %c0_i32_1 : i32, i32, i32
  }
  func.func @transform_1(%arg0: i32) -> (i32, i32) {
    %c0_i32 = arith.constant 0 : i32
    %c0_i32_0 = arith.constant 0 : i32
    %c0_i32_1 = arith.constant 0 : i32
    return %c0_i32, %c0_i32_0 : i32, i32
  }
  func.func @transform_2(%arg0: i32) -> (i32, i32) {
    %c0_i32 = arith.constant 0 : i32
    %c0_i32_0 = arith.constant 0 : i32
    %c0_i32_1 = arith.constant 0 : i32
    return %c0_i32, %c0_i32_0 : i32, i32
  }
  func.func @transform_3(%arg0: i32) -> (i32, i32) {
    %c0_i32 = arith.constant 0 : i32
    %c0_i32_0 = arith.constant 0 : i32
    %c0_i32_1 = arith.constant 0 : i32
    return %c0_i32, %c0_i32_0 : i32, i32
  }
}

</mosaic_0001>

<llo_original>
// kernel: atcnet_forward_pallas.1
$region0: #{atcnet_forward_pallas.1}
  #allocation0 [shape = 'u32[]', space=smem, size = 0x4, offset = 0x4, fixed_abs, tag = 'smem constant byte address 0x4 - core index']
  #allocation1 [shape = 'u32[144,128]{1,0:T(1,128)}', space=vmem, size = 0x12000, scoped, tag = 'internal scratch']
  %s0 = inlined_call_operand.vmem [shape: f32[2,8,320], index: 0, kind: input, shape index: {}]
  %s1 = inlined_call_operand.vmem [shape: f32[320,40], index: 1, kind: input, shape index: {}]
  %s2 = inlined_call_operand.vmem [shape: f32[208,80], index: 2, kind: input, shape index: {}]
  %s3 = inlined_call_operand.hbm [shape: f32[2,4], index: 3, kind: output, shape index: {}]
  %s4 = sld [smem:[#allocation0]]
  $region22: #{atcnet_forward_pallas.1} parent=0
    _
  %s6 = ssub.s32 1, %s4
  %s7 = scalar_select 0, %s6, %s4
  $region1: #{atcnet_forward_pallas.1} parent=0
    #allocation2 [shape = 'u8[1024]{0}', space=vmem, size = 0x400, scoped, tag = 'output window, operand 0, single buffered']
    #allocation3 [shape = 's32[1]{0}', space=sflag, size = 0x4, scoped, tag = 'scoped memory for atcnet_forward_pallas.1']
    %8 = vsyncpa [#allocation3], 0
    // Predicated region
    $region2: #{atcnet_forward_pallas.1} parent=1 // pred_check
      _
    $region3: #{atcnet_forward_pallas.1} parent=1 // pred_check_branch
      %10 = sbr.rel (0) target = $region5
    $region4: #{atcnet_forward_pallas.1} parent=1 // pred_region
      _
    $region5: #{atcnet_forward_pallas.1} parent=1 // pred_fallthru
      _
    // Predicated region
    $region6: #{atcnet_forward_pallas.1} parent=1 // pred_check
      _
    $region7: #{atcnet_forward_pallas.1} parent=1 // pred_check_branch
      %12 = sbr.rel (0) target = $region9
    $region8: #{atcnet_forward_pallas.1} parent=1 // pred_region
      _
    $region9: #{atcnet_forward_pallas.1} parent=1 // pred_fallthru
      _
    // Predicated region
    $region10: #{atcnet_forward_pallas.1} parent=1 // pred_check
      _
    $region11: #{atcnet_forward_pallas.1} parent=1 // pred_check_branch
      %14 = sbr.rel (0) target = $region13
    $region12: #{atcnet_forward_pallas.1} parent=1 // pred_region
      _
    $region13: #{atcnet_forward_pallas.1} parent=1 // pred_fallthru
      _
    %v15 = vld [vmem:[%s2 + $0x78] sm:$0xff]
    %v16 = vld [vmem:[%s2 + $0x80] sm:$0xff]
    %v17 = vld [vmem:[%s2 + $0x88] sm:$0xff]
    %v18 = vld [vmem:[%s2 + $0x90] sm:$0xff]
    %v19 = vld [vmem:[%s1] sm:$0xff]
    %v20 = vld [vmem:[%s1 + $0x8] sm:$0xff]
    %v21 = vld [vmem:[%s1 + $0x10] sm:$0xff]
    %v22 = vld [vmem:[%s1 + $0x18] sm:$0xff]
    %v23 = vld [vmem:[%s1 + $0x20] sm:$0xff]
    %v24 = vld [vmem:[%s1 + $0x28] sm:$0xff]
    %v25 = vld [vmem:[%s1 + $0x30] sm:$0xff]
    %v26 = vld [vmem:[%s1 + $0x38] sm:$0xff]
    %v27 = vld [vmem:[%s1 + $0x40] sm:$0xff]
    %v28 = vld [vmem:[%s1 + $0x48] sm:$0xff]
    %v29 = vld [vmem:[%s1 + $0x50] sm:$0xff]
    %v30 = vld [vmem:[%s1 + $0x58] sm:$0xff]
    %v31 = vld [vmem:[%s1 + $0x60] sm:$0xff]
    %v32 = vld [vmem:[%s1 + $0x68] sm:$0xff]
    %v33 = vld [vmem:[%s1 + $0x70] sm:$0xff]
    %v34 = vld [vmem:[%s1 + $0x78] sm:$0xff]
    %v35 = vld [vmem:[%s1 + $0x80] sm:$0xff]
    %v36 = vld [vmem:[%s1 + $0x88] sm:$0xff]
    %v37 = vld [vmem:[%s1 + $0x90] sm:$0xff]
    %v38 = vld [vmem:[%s1 + $0x98] sm:$0xff]
    %v39 = vld [vmem:[%s1 + $0xa0] sm:$0xff]
    %v40 = vld [vmem:[%s1 + $0xa8] sm:$0xff]
    %v41 = vld [vmem:[%s1 + $0xb0] sm:$0xff]
    %v42 = vld [vmem:[%s1 + $0xb8] sm:$0xff]
    %v43 = vld [vmem:[%s1 + $0xc0] sm:$0xff]
    %v44 = vld [vmem:[%s1 + $0xc8] sm:$0xff]
    %v45 = vld [vmem:[%s1 + $0xd0] sm:$0xff]
    %v46 = vld [vmem:[%s1 + $0xd8] sm:$0xff]
    %v47 = vld [vmem:[%s1 + $0xe0] sm:$0xff]
    %v48 = vld [vmem:[%s1 + $0xe8] sm:$0xff]
    %v49 = vld [vmem:[%s1 + $0xf0] sm:$0xff]
    %v50 = vld [vmem:[%s1 + $0xf8] sm:$0xff]
    %v51 = vld [vmem:[%s1 + $0x100] sm:$0xff]
    %v52 = vld [vmem:[%s1 + $0x108] sm:$0xff]
    %v53 = vld [vmem:[%s1 + $0x110] sm:$0xff]
    %v54 = vld [vmem:[%s1 + $0x118] sm:$0xff]
    %v55 = vld [vmem:[%s1 + $0x120] sm:$0xff]
    %v56 = vld [vmem:[%s1 + $0x128] sm:$0xff]
    %v57 = vld [vmem:[%s1 + $0x130] sm:$0xff]
    %v58 = vld [vmem:[%s1 + $0x138] sm:$0xff]
    %v59 = vld [vmem:[%s0] sm:$0xff]
    %v60 = vld [vmem:[%s0 + $0x8] sm:$0xff]
    %v61 = vld [vmem:[%s0 + $0x10] sm:$0xff]
    %63 = vset.pattern.permute.xlu0 0
    %64 = vperm.xlu0 %63, %v16
    %v65 = vpop.permute.xlu0 %64
    %vm67 = vcmask 64512
    %v69 = vsel %vm67, %v15, 0
    %71 = vmatprep.subr.mxu0 0.0
    %72 = vmatpush1.msra.mxu0 0.0
    %73 = vmatprep.subr.mxu0 0.0
    %74 = vmatpush1.msra.mxu0 0.0
    %75 = vmatprep.subr.mxu0 0.0
    %76 = vmatpush1.msra.mxu0 0.0
    %77 = vmatprep.subr.mxu0 0.0
    %78 = vmatpush1.msra.mxu0 0.0
    %79 = vmatprep.subr.mxu0 0.0
    %80 = vmatpush1.msra.mxu0 0.0
    %81 = vmatprep.subr.mxu0 0.0
    %82 = vmatpush1.msra.mxu0 0.0
    %83 = vmatprep.subr.mxu0 0.0
    %84 = vmatpush1.msra.mxu0 0.0
    %85 = vmatprep.subr.mxu0 0.0
    %86 = vmatpush1.msra.mxu0 0.0
    %87 = vmatprep.subr.mxu0 0.0
    %88 = vmatpush1.msra.mxu0 0.0
    %89 = vmatprep.subr.mxu0 0.0
    %90 = vmatpush1.msra.mxu0 0.0
    %91 = vmatprep.subr.mxu0 0.0
    %92 = vmatpush1.msra.mxu0 0.0
    %93 = vmatprep.subr.mxu0 0.0
    %94 = vmatpush1.msra.mxu0 0.0
    %95 = vmatprep.subr.mxu0 0.0
    %96 = vmatpush1.msra.mxu0 0.0
    %97 = vmatprep.subr.mxu0 0.0
    %98 = vmatpush1.msra.mxu0 0.0
    %99 = vmatprep.subr.mxu0 0.0
    %100 = vmatpush1.msra.mxu0 0.0
    %101 = vmatprep.subr.mxu0 %v60
    %102 = vmatpush1.msra.mxu0 %v59
    %103 = vmatprep.subr.mxu0 0.0
    %104 = vmatpush2.msra.mxu0 0.0
    %105 = vmatprep.subr.mxu0 0.0
    %106 = vmatpush2.msra.mxu0 0.0
    %107 = vmatprep.subr.mxu0 0.0
    %108 = vmatpush2.msra.mxu0 0.0
    %109 = vmatprep.subr.mxu0 0.0
    %110 = vmatpush2.msra.mxu0 0.0
    %111 = vmatprep.subr.mxu0 0.0
    %112 = vmatpush2.msra.mxu0 0.0
    %113 = vmatprep.subr.mxu0 0.0
    %114 = vmatpush2.msra.mxu0 0.0
    %115 = vmatprep.subr.mxu0 0.0
    %116 = vmatpush2.msra.mxu0 0.0
    %117 = vmatprep.subr.mxu0 0.0
    %118 = vmatpush2.msra.mxu0 0.0
    %119 = vmatprep.subr.mxu0 0.0
    %120 = vmatpush2.msra.mxu0 0.0
    %121 = vmatprep.subr.mxu0 0.0
    %122 = vmatpush2.msra.mxu0 0.0
    %123 = vmatprep.subr.mxu0 0.0
    %124 = vmatpush2.msra.mxu0 0.0
    %125 = vmatprep.subr.mxu0 0.0
    %126 = vmatpush2.msra.mxu0 0.0
    %127 = vmatprep.subr.mxu0 0.0
    %128 = vmatpush2.msra.mxu0 0.0
    %129 = vmatprep.subr.mxu0 0.0
    %130 = vmatpush2.msra.mxu0 0.0
    %131 = vmatprep.subr.mxu0 0.0
    %132 = vmatpush2.msra.mxu0 0.0
    %133 = vmatprep.subr.mxu0 0.0
    %134 = vmatpush2.msra.mxu0 0.0
    %135 = vmatprep.mubr.f32.mxu0 0.0
    %136 = vmatmul.mubr.f32.gmra.mxu0 %v69
    %v137 = vpop.f32.mrf.mxu0
    %v138 = vadd.f32 %v65, %v137
    %v139 = vpop.f32.mrf.mxu0
    %v140 = vadd.f32 %v65, %v139
    %141 = vdwg.mxu0
    %142 = vmatprep.subr.mxu0 0.0
    %143 = vmatpush1.msra.mxu0 0.0
    %144 = vmatprep.subr.mxu0 0.0
    %145 = vmatpush1.msra.mxu0 0.0
    %146 = vmatprep.subr.mxu0 0.0
    %147 = vmatpush1.msra.mxu0 0.0
    %148 = vmatprep.subr.mxu0 0.0
    %149 = vmatpush1.msra.mxu0 0.0
    %150 = vmatprep.subr.mxu0 0.0
    %151 = vmatpush1.msra.mxu0 0.0
    %152 = vmatprep.subr.mxu0 0.0
    %153 = vmatpush1.msra.mxu0 0.0
    %154 = vmatprep.subr.mxu0 0.0
    %155 = vmatpush1.msra.mxu0 0.0
    %156 = vmatprep.subr.mxu0 0.0
    %157 = vmatpush1.msra.mxu0 0.0
    %158 = vmatprep.subr.mxu0 0.0
    %159 = vmatpush1.msra.mxu0 0.0
    %160 = vmatprep.subr.mxu0 0.0
    %161 = vmatpush1.msra.mxu0 0.0
    %162 = vmatprep.subr.mxu0 0.0
    %163 = vmatpush1.msra.mxu0 0.0
    %164 = vmatprep.subr.mxu0 0.0
    %165 = vmatpush1.msra.mxu0 0.0
    %166 = vmatprep.subr.mxu0 0.0
    %167 = vmatpush1.msra.mxu0 0.0
    %168 = vmatprep.subr.mxu0 0.0
    %169 = vmatpush1.msra.mxu0 0.0
    %170 = vmatprep.subr.mxu0 0.0
    %171 = vmatpush1.msra.mxu0 0.0
    %172 = vmatprep.subr.mxu0 0.0
    %173 = vmatpush1.msra.mxu0 %v61
    %174 = vmatprep.subr.mxu0 0.0
    %175 = vmatpush2.msra.mxu0 0.0
    %176 = vmatprep.subr.mxu0 0.0
    %177 = vmatpush2.msra.mxu0 0.0
    %178 = vmatprep.subr.mxu0 0.0
    %179 = vmatpush2.msra.mxu0 0.0
    %180 = vmatprep.subr.mxu0 0.0
    %181 = vmatpush2.msra.mxu0 0.0
    %182 = vmatprep.subr.mxu0 0.0
    %183 = vmatpush2.msra.mxu0 0.0
    %184 = vmatprep.subr.mxu0 0.0
    %185 = vmatpush2.msra.mxu0 0.0
    %186 = vmatprep.subr.mxu0 0.0
    %187 = vmatpush2.msra.mxu0 0.0
    %188 = vmatprep.subr.mxu0 0.0
    %189 = vmatpush2.msra.mxu0 0.0
    %190 = vmatprep.subr.mxu0 0.0
    %191 = vmatpush2.msra.mxu0 0.0
    %192 = vmatprep.subr.mxu0 0.0
    %193 = vmatpush2.msra.mxu0 0.0
    %194 = vmatprep.subr.mxu0 0.0
    %195 = vmatpush2.msra.mxu0 0.0
    %196 = vmatprep.subr.mxu0 0.0
    %197 = vmatpush2.msra.mxu0 0.0
    %198 = vmatprep.subr.mxu0 0.0
    %199 = vmatpush2.msra.mxu0 0.0
    %200 = vmatprep.subr.mxu0 0.0
    %201 = vmatpush2.msra.mxu0 0.0
    %202 = vmatprep.subr.mxu0 0.0
    %203 = vmatpush2.msra.mxu0 0.0
    %204 = vmatprep.subr.mxu0 0.0
    %205 = vmatpush2.msra.mxu0 0.0
    %206 = vmatprep.mubr.f32.mxu0 0.0
    %207 = vmatmul.mubr.f32.gmra.mxu0 %v69
    %v208 = vpop.f32.mrf.mxu0
    %v209 = vadd.f32 %v65, %v208
    %v210 = vpop.f32.mrf.mxu0
    %211 = vdwg.mxu0
    %vm212 = vcmp.gt.f32.partialorder %v138, 0.0
    %vm213 = vcmp.gt.f32.partialorder %v140, 0.0
    %vm214 = vcmp.gt.f32.partialorder %v209, 0.0
    %v215 = vmin.f32 %v138, 0.0
    %v216 = vmin.f32 %v140, 0.0
    %v217 = vmin.f32 %v209, 0.0
    %v218 = vmul.f32 %v215, 1.442695
    %v219 = vpow.pop %v218
    %v220 = vmul.f32 %v216, 1.442695
    %v221 = vpow.pop %v220
    %v222 = vmul.f32 %v217, 1.442695
    %v223 = vpow.pop %v222
    %v224 = vsub.f32 %v219, 1.0
    %v225 = vsub.f32 %v221, 1.0
    %v226 = vsub.f32 %v223, 1.0
    %v227 = vsel %vm212, %v138, %v224
    %v228 = vsel %vm213, %v140, %v225
    %v229 = vsel %vm214, %v209, %v226
    %vm230 = vcmask 523264
    %v232 = vsel %vm230, %v229, 0
    %234 = vmatprep.subr.mxu0 0.0
    %235 = vmatpush1.msra.mxu0 %v34
    %236 = vmatprep.subr.mxu0 0.0
    %237 = vmatpush1.msra.mxu0 %v33
    %238 = vmatprep.subr.mxu0 0.0
    %239 = vmatpush1.msra.mxu0 %v32
    %240 = vmatprep.subr.mxu0 0.0
    %241 = vmatpush1.msra.mxu0 %v31
    %242 = vmatprep.subr.mxu0 0.0
    %243 = vmatpush1.msra.mxu0 %v30
    %244 = vmatprep.subr.mxu0 0.0
    %245 = vmatpush1.msra.mxu0 %v29
    %246 = vmatprep.subr.mxu0 0.0
    %247 = vmatpush1.msra.mxu0 %v28
    %248 = vmatprep.subr.mxu0 0.0
    %249 = vmatpush1.msra.mxu0 %v27
    %250 = vmatprep.subr.mxu0 0.0
    %251 = vmatpush1.msra.mxu0 %v26
    %252 = vmatprep.subr.mxu0 0.0
    %253 = vmatpush1.msra.mxu0 %v25
    %254 = vmatprep.subr.mxu0 0.0
    %255 = vmatpush1.msra.mxu0 %v24
    %256 = vmatprep.subr.mxu0 0.0
    %257 = vmatpush1.msra.mxu0 %v23
    %258 = vmatprep.subr.mxu0 0.0
    %259 = vmatpush1.msra.mxu0 %v22
    %260 = vmatprep.subr.mxu0 0.0
    %261 = vmatpush1.msra.mxu0 %v21
    %262 = vmatprep.subr.mxu0 0.0
    %263 = vmatpush1.msra.mxu0 %v20
    %264 = vmatprep.subr.mxu0 0.0
    %265 = vmatpush1.msra.mxu0 %v19
    %266 = vmatprep.subr.mxu0 0.0
    %267 = vmatpush2.msra.mxu0 %v50
    %268 = vmatprep.subr.mxu0 0.0
    %269 = vmatpush2.msra.mxu0 %v49
    %270 = vmatprep.subr.mxu0 0.0
    %271 = vmatpush2.msra.mxu0 %v48
    %272 = vmatprep.subr.mxu0 0.0
    %273 = vmatpush2.msra.mxu0 %v47
    %274 = vmatprep.subr.mxu0 0.0
    %275 = vmatpush2.msra.mxu0 %v46
    %276 = vmatprep.subr.mxu0 0.0
    %277 = vmatpush2.msra.mxu0 %v45
    %278 = vmatprep.subr.mxu0 0.0
    %279 = vmatpush2.msra.mxu0 %v44
    %280 = vmatprep.subr.mxu0 0.0
    %281 = vmatpush2.msra.mxu0 %v43
    %282 = vmatprep.subr.mxu0 0.0
    %283 = vmatpush2.msra.mxu0 %v42
    %284 = vmatprep.subr.mxu0 0.0
    %285 = vmatpush2.msra.mxu0 %v41
    %286 = vmatprep.subr.mxu0 0.0
    %287 = vmatpush2.msra.mxu0 %v40
    %288 = vmatprep.subr.mxu0 0.0
    %289 = vmatpush2.msra.mxu0 %v39
    %290 = vmatprep.subr.mxu0 0.0
    %291 = vmatpush2.msra.mxu0 %v38
    %292 = vmatprep.subr.mxu0 0.0
    %293 = vmatpush2.msra.mxu0 %v37
    %294 = vmatprep.subr.mxu0 0.0
    %295 = vmatpush2.msra.mxu0 %v36
    %296 = vmatprep.subr.mxu0 0.0
    %297 = vmatpush2.msra.mxu0 %v35
    %298 = vmatprep.mubr.f32.mxu0 %v228
    %299 = vmatmul.mubr.f32.gmra.mxu0 %v227
    %v300 = vpop.f32.mrf.mxu0
    %v301 = vadd.f32 0.0, %v300
    %v302 = vpop.f32.mrf.mxu0
    %303 = vdwg.mxu0
    %304 = vmatprep.subr.mxu0 0.0
    %305 = vmatpush1.msra.mxu0 0.0
    %306 = vmatprep.subr.mxu0 0.0
    %307 = vmatpush1.msra.mxu0 0.0
    %308 = vmatprep.subr.mxu0 0.0
    %309 = vmatpush1.msra.mxu0 0.0
    %310 = vmatprep.subr.mxu0 0.0
    %311 = vmatpush1.msra.mxu0 0.0
    %312 = vmatprep.subr.mxu0 0.0
    %313 = vmatpush1.msra.mxu0 0.0
    %314 = vmatprep.subr.mxu0 0.0
    %315 = vmatpush1.msra.mxu0 0.0
    %316 = vmatprep.subr.mxu0 0.0
    %317 = vmatpush1.msra.mxu0 0.0
    %318 = vmatprep.subr.mxu0 0.0
    %319 = vmatpush1.msra.mxu0 0.0
    %320 = vmatprep.subr.mxu0 0.0
    %321 = vmatpush1.msra.mxu0 %v58
    %322 = vmatprep.subr.mxu0 0.0
    %323 = vmatpush1.msra.mxu0 %v57
    %324 = vmatprep.subr.mxu0 0.0
    %325 = vmatpush1.msra.mxu0 %v56
    %326 = vmatprep.subr.mxu0 0.0
    %327 = vmatpush1.msra.mxu0 %v55
    %328 = vmatprep.subr.mxu0 0.0
    %329 = vmatpush1.msra.mxu0 %v54
    %330 = vmatprep.subr.mxu0 0.0
    %331 = vmatpush1.msra.mxu0 %v53
    %332 = vmatprep.subr.mxu0 0.0
    %333 = vmatpush1.msra.mxu0 %v52
    %334 = vmatprep.subr.mxu0 0.0
    %335 = vmatpush1.msra.mxu0 %v51
    %336 = vmatprep.subr.mxu0 0.0
    %337 = vmatpush2.msra.mxu0 0.0
    %338 = vmatprep.subr.mxu0 0.0
    %339 = vmatpush2.msra.mxu0 0.0
    %340 = vmatprep.subr.mxu0 0.0
    %341 = vmatpush2.msra.mxu0 0.0
    %342 = vmatprep.subr.mxu0 0.0
    %343 = vmatpush2.msra.mxu0 0.0
    %344 = vmatprep.subr.mxu0 0.0
    %345 = vmatpush2.msra.mxu0 0.0
    %346 = vmatprep.subr.mxu0 0.0
    %347 = vmatpush2.msra.mxu0 0.0
    %348 = vmatprep.subr.mxu0 0.0
    %349 = vmatpush2.msra.mxu0 0.0
    %350 = vmatprep.subr.mxu0 0.0
    %351 = vmatpush2.msra.mxu0 0.0
    %352 = vmatprep.subr.mxu0 0.0
    %353 = vmatpush2.msra.mxu0 0.0
    %354 = vmatprep.subr.mxu0 0.0
    %355 = vmatpush2.msra.mxu0 0.0
    %356 = vmatprep.subr.mxu0 0.0
    %357 = vmatpush2.msra.mxu0 0.0
    %358 = vmatprep.subr.mxu0 0.0
    %359 = vmatpush2.msra.mxu0 0.0
    %360 = vmatprep.subr.mxu0 0.0
    %361 = vmatpush2.msra.mxu0 0.0
    %362 = vmatprep.subr.mxu0 0.0
    %363 = vmatpush2.msra.mxu0 0.0
    %364 = vmatprep.subr.mxu0 0.0
    %365 = vmatpush2.msra.mxu0 0.0
    %366 = vmatprep.subr.mxu0 0.0
    %367 = vmatpush2.msra.mxu0 0.0
    %368 = vmatprep.mubr.f32.mxu0 0.0
    %369 = vmatmul.mubr.f32.gmra.mxu0 %v232
    %v370 = vpop.f32.mrf.mxu0
    %v371 = vadd.f32 %v301, %v370
    %v372 = vpop.f32.mrf.mxu0
    %373 = vdwg.mxu0
    %s374 = scalar_lea.vmem %s0, 24
    %v375 = vld [vmem:[%s374] sm:$0xff]
    %v376 = vld [vmem:[%s374 + $0x8] sm:$0xff]
    %v377 = vld [vmem:[%s374 + $0x10] sm:$0xff]
    %378 = vmatprep.subr.mxu0 0.0
    %379 = vmatpush1.msra.mxu0 0.0
    %380 = vmatprep.subr.mxu0 0.0
    %381 = vmatpush1.msra.mxu0 0.0
    %382 = vmatprep.subr.mxu0 0.0
    %383 = vmatpush1.msra.mxu0 0.0
    %384 = vmatprep.subr.mxu0 0.0
    %385 = vmatpush1.msra.mxu0 0.0
    %386 = vmatprep.subr.mxu0 0.0
    %387 = vmatpush1.msra.mxu0 0.0
    %388 = vmatprep.subr.mxu0 0.0
    %389 = vmatpush1.msra.mxu0 0.0
    %390 = vmatprep.subr.mxu0 0.0
    %391 = vmatpush1.msra.mxu0 0.0
    %392 = vmatprep.subr.mxu0 0.0
    %393 = vmatpush1.msra.mxu0 0.0
    %394 = vmatprep.subr.mxu0 0.0
    %395 = vmatpush1.msra.mxu0 0.0
    %396 = vmatprep.subr.mxu0 0.0
    %397 = vmatpush1.msra.mxu0 0.0
    %398 = vmatprep.subr.mxu0 0.0
    %399 = vmatpush1.msra.mxu0 0.0
    %400 = vmatprep.subr.mxu0 0.0
    %401 = vmatpush1.msra.mxu0 0.0
    %402 = vmatprep.subr.mxu0 0.0
    %403 = vmatpush1.msra.mxu0 0.0
    %404 = vmatprep.subr.mxu0 0.0
    %405 = vmatpush1.msra.mxu0 0.0
    %406 = vmatprep.subr.mxu0 0.0
    %407 = vmatpush1.msra.mxu0 0.0
    %408 = vmatprep.subr.mxu0 %v376
    %409 = vmatpush1.msra.mxu0 %v375
    %410 = vmatprep.subr.mxu0 0.0
    %411 = vmatpush2.msra.mxu0 0.0
    %412 = vmatprep.subr.mxu0 0.0
    %413 = vmatpush2.msra.mxu0 0.0
    %414 = vmatprep.subr.mxu0 0.0
    %415 = vmatpush2.msra.mxu0 0.0
    %416 = vmatprep.subr.mxu0 0.0
    %417 = vmatpush2.msra.mxu0 0.0
    %418 = vmatprep.subr.mxu0 0.0
    %419 = vmatpush2.msra.mxu0 0.0
    %420 = vmatprep.subr.mxu0 0.0
    %421 = vmatpush2.msra.mxu0 0.0
    %422 = vmatprep.subr.mxu0 0.0
    %423 = vmatpush2.msra.mxu0 0.0
    %424 = vmatprep.subr.mxu0 0.0
    %425 = vmatpush2.msra.mxu0 0.0
    %426 = vmatprep.subr.mxu0 0.0
    %427 = vmatpush2.msra.mxu0 0.0
    %428 = vmatprep.subr.mxu0 0.0
    %429 = vmatpush2.msra.mxu0 0.0
    %430 = vmatprep.subr.mxu0 0.0
    %431 = vmatpush2.msra.mxu0 0.0
    %432 = vmatprep.subr.mxu0 0.0
    %433 = vmatpush2.msra.mxu0 0.0
    %434 = vmatprep.subr.mxu0 0.0
    %435 = vmatpush2.msra.mxu0 0.0
    %436 = vmatprep.subr.mxu0 0.0
    %437 = vmatpush2.msra.mxu0 0.0
    %438 = vmatprep.subr.mxu0 0.0
    %439 = vmatpush2.msra.mxu0 0.0
    %440 = vmatprep.subr.mxu0 0.0
    %441 = vmatpush2.msra.mxu0 0.0
    %442 = vmatprep.mubr.f32.mxu0 0.0
    %443 = vmatmul.mubr.f32.gmra.mxu0 %v69
    %v444 = vpop.f32.mrf.mxu0
    %v445 = vadd.f32 %v65, %v444
    %v446 = vpop.f32.mrf.mxu0
    %v447 = vadd.f32 %v65, %v446
    %448 = vdwg.mxu0
    %449 = vmatprep.subr.mxu0 0.0
    %450 = vmatpush1.msra.mxu0 0.0
    %451 = vmatprep.subr.mxu0 0.0
    %452 = vmatpush1.msra.mxu0 0.0
    %453 = vmatprep.subr.mxu0 0.0
    %454 = vmatpush1.msra.mxu0 0.0
    %455 = vmatprep.subr.mxu0 0.0
    %456 = vmatpush1.msra.mxu0 0.0
    %457 = vmatprep.subr.mxu0 0.0
    %458 = vmatpush1.msra.mxu0 0.0
    %459 = vmatprep.subr.mxu0 0.0
    %460 = vmatpush1.msra.mxu0 0.0
    %461 = vmatprep.subr.mxu0 0.0
    %462 = vmatpush1.msra.mxu0 0.0
    %463 = vmatprep.subr.mxu0 0.0
    %464 = vmatpush1.msra.mxu0 0.0
    %465 = vmatprep.subr.mxu0 0.0
    %466 = vmatpush1.msra.mxu0 0.0
    %467 = vmatprep.subr.mxu0 0.0
    %468 = vmatpush1.msra.mxu0 0.0
    %469 = vmatprep.subr.mxu0 0.0
    %470 = vmatpush1.msra.mxu0 0.0
    %471 = vmatprep.subr.mxu0 0.0
    %472 = vmatpush1.msra.mxu0 0.0
    %473 = vmatprep.subr.mxu0 0.0
    %474 = vmatpush1.msra.mxu0 0.0
    %475 = vmatprep.subr.mxu0 0.0
    %476 = vmatpush1.msra.mxu0 0.0
    %477 = vmatprep.subr.mxu0 0.0
    %478 = vmatpush1.msra.mxu0 0.0
    %479 = vmatprep.subr.mxu0 0.0
    %480 = vmatpush1.msra.mxu0 %v377
    %481 = vmatprep.subr.mxu0 0.0
    %482 = vmatpush2.msra.mxu0 0.0
    %483 = vmatprep.subr.mxu0 0.0
    %484 = vmatpush2.msra.mxu0 0.0
    %485 = vmatprep.subr.mxu0 0.0
    %486 = vmatpush2.msra.mxu0 0.0
    %487 = vmatprep.subr.mxu0 0.0
    %488 = vmatpush2.msra.mxu0 0.0
    %489 = vmatprep.subr.mxu0 0.0
    %490 = vmatpush2.msra.mxu0 0.0
    %491 = vmatprep.subr.mxu0 0.0
    %492 = vmatpush2.msra.mxu0 0.0
    %493 = vmatprep.subr.mxu0 0.0
    %494 = vmatpush2.msra.mxu0 0.0
    %495 = vmatprep.subr.mxu0 0.0
    %496 = vmatpush2.msra.mxu0 0.0
    %497 = vmatprep.subr.mxu0 0.0
    %498 = vmatpush2.msra.mxu0 0.0
    %499 = vmatprep.subr.mxu0 0.0
    %500 = vmatpush2.msra.mxu0 0.0
    %501 = vmatprep.subr.mxu0 0.0
    %502 = vmatpush2.msra.mxu0 0.0
    %503 = vmatprep.subr.mxu0 0.0
    %504 = vmatpush2.msra.mxu0 0.0
    %505 = vmatprep.subr.mxu0 0.0
    %506 = vmatpush2.msra.mxu0 0.0
    %507 = vmatprep.subr.mxu0 0.0
    %508 = vmatpush2.msra.mxu0 0.0
    %509 = vmatprep.subr.mxu0 0.0
    %510 = vmatpush2.msra.mxu0 0.0
    %511 = vmatprep.subr.mxu0 0.0
    %512 = vmatpush2.msra.mxu0 0.0
    %513 = vmatprep.mubr.f32.mxu0 0.0
    %514 = vmatmul.mubr.f32.gmra.mxu0 %v69
    %v515 = vpop.f32.mrf.mxu0
    %v516 = vadd.f32 %v65, %v515
    %v517 = vpop.f32.mrf.mxu0
    %518 = vdwg.mxu0
    %vm519 = vcmp.gt.f32.partialorder %v445, 0.0
    %vm520 = vcmp.gt.f32.partialorder %v447, 0.0
    %vm521 = vcmp.gt.f32.partialorder %v516, 0.0
    %v522 = vmin.f32 %v445, 0.0
    %v523 = vmin.f32 %v447, 0.0
    %v524 = vmin.f32 %v516, 0.0
    %v525 = vmul.f32 %v522, 1.442695
    %v526 = vpow.pop %v525
    %v527 = vmul.f32 %v523, 1.442695
    %v528 = vpow.pop %v527
    %v529 = vmul.f32 %v524, 1.442695
    %v530 = vpow.pop %v529
    %v531 = vsub.f32 %v526, 1.0
    %v532 = vsub.f32 %v528, 1.0
    %v533 = vsub.f32 %v530, 1.0
    %v534 = vsel %vm519, %v445, %v531
    %v535 = vsel %vm520, %v447, %v532
    %v536 = vsel %vm521, %v516, %v533
    %v538 = vsel %vm230, %v536, 0
    %540 = vmatprep.subr.mxu0 0.0
    %541 = vmatpush1.msra.mxu0 %v34
    %542 = vmatprep.subr.mxu0 0.0
    %543 = vmatpush1.msra.mxu0 %v33
    %544 = vmatprep.subr.mxu0 0.0
    %545 = vmatpush1.msra.mxu0 %v32
    %546 = vmatprep.subr.mxu0 0.0
    %547 = vmatpush1.msra.mxu0 %v31
    %548 = vmatprep.subr.mxu0 0.0
    %549 = vmatpush1.msra.mxu0 %v30
    %550 = vmatprep.subr.mxu0 0.0
    %551 = vmatpush1.msra.mxu0 %v29
    %552 = vmatprep.subr.mxu0 0.0
    %553 = vmatpush1.msra.mxu0 %v28
    %554 = vmatprep.subr.mxu0 0.0
    %555 = vmatpush1.msra.mxu0 %v27
    %556 = vmatprep.subr.mxu0 0.0
    %557 = vmatpush1.msra.mxu0 %v26
    %558 = vmatprep.subr.mxu0 0.0
    %559 = vmatpush1.msra.mxu0 %v25
    %560 = vmatprep.subr.mxu0 0.0
    %561 = vmatpush1.msra.mxu0 %v24
    %562 = vmatprep.subr.mxu0 0.0
    %563 = vmatpush1.msra.mxu0 %v23
    %564 = vmatprep.subr.mxu0 0.0
    %565 = vmatpush1.msra.mxu0 %v22
    %566 = vmatprep.subr.mxu0 0.0
    %567 = vmatpush1.msra.mxu0 %v21
    %568 = vmatprep.subr.mxu0 0.0
    %569 = vmatpush1.msra.mxu0 %v20
    %570 = vmatprep.subr.mxu0 0.0
    %571 = vmatpush1.msra.mxu0 %v19
    %572 = vmatprep.subr.mxu0 0.0
    %573 = vmatpush2.msra.mxu0 %v50
    %574 = vmatprep.subr.mxu0 0.0
    %575 = vmatpush2.msra.mxu0 %v49
    %576 = vmatprep.subr.mxu0 0.0
    %577 = vmatpush2.msra.mxu0 %v48
    %578 = vmatprep.subr.mxu0 0.0
    %579 = vmatpush2.msra.mxu0 %v47
    %580 = vmatprep.subr.mxu0 0.0
    %581 = vmatpush2.msra.mxu0 %v46
    %582 = vmatprep.subr.mxu0 0.0
    %583 = vmatpush2.msra.mxu0 %v45
    %584 = vmatprep.subr.mxu0 0.0
    %585 = vmatpush2.msra.mxu0 %v44
    %586 = vmatprep.subr.mxu0 0.0
    %587 = vmatpush2.msra.mxu0 %v43
    %588 = vmatprep.subr.mxu0 0.0
    %589 = vmatpush2.msra.mxu0 %v42
    %590 = vmatprep.subr.mxu0 0.0
    %591 = vmatpush2.msra.mxu0 %v41
    %592 = vmatprep.subr.mxu0 0.0
    %593 = vmatpush2.msra.mxu0 %v40
    %594 = vmatprep.subr.mxu0 0.0
    %595 = vmatpush2.msra.mxu0 %v39
    %596 = vmatprep.subr.mxu0 0.0
    %597 = vmatpush2.msra.mxu0 %v38
    %598 = vmatprep.subr.mxu0 0.0
    %599 = vmatpush2.msra.mxu0 %v37
    %600 = vmatprep.subr.mxu0 0.0
    %601 = vmatpush2.msra.mxu0 %v36
    %602 = vmatprep.subr.mxu0 0.0
    %603 = vmatpush2.msra.mxu0 %v35
    %604 = vmatprep.mubr.f32.mxu0 %v535
    %605 = vmatmul.mubr.f32.gmra.mxu0 %v534
    %v606 = vpop.f32.mrf.mxu0
    %v607 = vadd.f32 0.0, %v606
    %v608 = vpop.f32.mrf.mxu0
    %609 = vdwg.mxu0
    %610 = vmatprep.subr.mxu0 0.0
    %611 = vmatpush1.msra.mxu0 0.0
    %612 = vmatprep.subr.mxu0 0.0
    %613 = vmatpush1.msra.mxu0 0.0
    %614 = vmatprep.subr.mxu0 0.0
    %615 = vmatpush1.msra.mxu0 0.0
    %616 = vmatprep.subr.mxu0 0.0
    %617 = vmatpush1.msra.mxu0 0.0
    %618 = vmatprep.subr.mxu0 0.0
    %619 = vmatpush1.msra.mxu0 0.0
    %620 = vmatprep.subr.mxu0 0.0
    %621 = vmatpush1.msra.mxu0 0.0
    %622 = vmatprep.subr.mxu0 0.0
    %623 = vmatpush1.msra.mxu0 0.0
    %624 = vmatprep.subr.mxu0 0.0
    %625 = vmatpush1.msra.mxu0 0.0
    %626 = vmatprep.subr.mxu0 0.0
    %627 = vmatpush1.msra.mxu0 %v58
    %628 = vmatprep.subr.mxu0 0.0
    %629 = vmatpush1.msra.mxu0 %v57
    %630 = vmatprep.subr.mxu0 0.0
    %631 = vmatpush1.msra.mxu0 %v56
    %632 = vmatprep.subr.mxu0 0.0
    %633 = vmatpush1.msra.mxu0 %v55
    %634 = vmatprep.subr.mxu0 0.0
    %635 = vmatpush1.msra.mxu0 %v54
    %636 = vmatprep.subr.mxu0 0.0
    %637 = vmatpush1.msra.mxu0 %v53
    %638 = vmatprep.subr.mxu0 0.0
    %639 = vmatpush1.msra.mxu0 %v52
    %640 = vmatprep.subr.mxu0 0.0
    %641 = vmatpush1.msra.mxu0 %v51
    %642 = vmatprep.subr.mxu0 0.0
    %643 = vmatpush2.msra.mxu0 0.0
    %644 = vmatprep.subr.mxu0 0.0
    %645 = vmatpush2.msra.mxu0 0.0
    %646 = vmatprep.subr.mxu0 0.0
    %647 = vmatpush2.msra.mxu0 0.0
    %648 = vmatprep.subr.mxu0 0.0
    %649 = vmatpush2.msra.mxu0 0.0
    %650 = vmatprep.subr.mxu0 0.0
    %651 = vmatpush2.msra.mxu0 0.0
    %652 = vmatprep.subr.mxu0 0.0
    %653 = vmatpush2.msra.mxu0 0.0
    %654 = vmatprep.subr.mxu0 0.0
    %655 = vmatpush2.msra.mxu0 0.0
    %656 = vmatprep.subr.mxu0 0.0
    %657 = vmatpush2.msra.mxu0 0.0
    %658 = vmatprep.subr.mxu0 0.0
    %659 = vmatpush2.msra.mxu0 0.0
    %660 = vmatprep.subr.mxu0 0.0
    %661 = vmatpush2.msra.mxu0 0.0
    %662 = vmatprep.subr.mxu0 0.0
    %663 = vmatpush2.msra.mxu0 0.0
    %664 = vmatprep.subr.mxu0 0.0
    %665 = vmatpush2.msra.mxu0 0.0
    %666 = vmatprep.subr.mxu0 0.0
    %667 = vmatpush2.msra.mxu0 0.0
    %668 = vmatprep.subr.mxu0 0.0
    %669 = vmatpush2.msra.mxu0 0.0
    %670 = vmatprep.subr.mxu0 0.0
    %671 = vmatpush2.msra.mxu0 0.0
    %672 = vmatprep.subr.mxu0 0.0
    %673 = vmatpush2.msra.mxu0 0.0
    %674 = vmatprep.mubr.f32.mxu0 0.0
    %675 = vmatmul.mubr.f32.gmra.mxu0 %v538
    %v676 = vpop.f32.mrf.mxu0
    %v677 = vadd.f32 %v607, %v676
    %v678 = vpop.f32.mrf.mxu0
    %679 = vdwg.mxu0
    %681 = vrot.lane.b32.xlu0 %v677, 40
    %v682 = vpop.permute.xlu0 %681
    %vm684 = vcmask 326656
    %v685 = vsel %vm684, %v371, %v682
    %687 = vset.pattern.permute.xlu0 0
    %688 = vperm.xlu0 %687, %v18
    %v689 = vpop.permute.xlu0 %688
    %v692 = vsel %vm67, %v17, 0
    %694 = vmatprep.subr.mxu0 0.0
    %695 = vmatpush1.msra.mxu0 0.0
    %696 = vmatprep.subr.mxu0 0.0
    %697 = vmatpush1.msra.mxu0 0.0
    %698 = vmatprep.subr.mxu0 0.0
    %699 = vmatpush1.msra.mxu0 0.0
    %700 = vmatprep.subr.mxu0 0.0
    %701 = vmatpush1.msra.mxu0 0.0
    %702 = vmatprep.subr.mxu0 0.0
    %703 = vmatpush1.msra.mxu0 0.0
    %704 = vmatprep.subr.mxu0 0.0
    %705 = vmatpush1.msra.mxu0 0.0
    %706 = vmatprep.subr.mxu0 0.0
    %707 = vmatpush1.msra.mxu0 0.0
    %708 = vmatprep.subr.mxu0 0.0
    %709 = vmatpush1.msra.mxu0 0.0
    %710 = vmatprep.subr.mxu0 0.0
    %711 = vmatpush1.msra.mxu0 0.0
    %712 = vmatprep.subr.mxu0 0.0
    %713 = vmatpush1.msra.mxu0 0.0
    %714 = vmatprep.subr.mxu0 0.0
    %715 = vmatpush1.msra.mxu0 0.0
    %716 = vmatprep.subr.mxu0 0.0
    %717 = vmatpush1.msra.mxu0 0.0
    %718 = vmatprep.subr.mxu0 0.0
    %719 = vmatpush1.msra.mxu0 0.0
    %720 = vmatprep.subr.mxu0 0.0
    %721 = vmatpush1.msra.mxu0 0.0
    %722 = vmatprep.subr.mxu0 0.0
    %723 = vmatpush1.msra.mxu0 0.0
    %724 = vmatprep.subr.mxu0 0.0
    %725 = vmatpush1.msra.mxu0 %v685
    %726 = vmatprep.subr.mxu0 0.0
    %727 = vmatpush2.msra.mxu0 0.0
    %728 = vmatprep.subr.mxu0 0.0
    %729 = vmatpush2.msra.mxu0 0.0
    %730 = vmatprep.subr.mxu0 0.0
    %731 = vmatpush2.msra.mxu0 0.0
    %732 = vmatprep.subr.mxu0 0.0
    %733 = vmatpush2.msra.mxu0 0.0
    %734 = vmatprep.subr.mxu0 0.0
    %735 = vmatpush2.msra.mxu0 0.0
    %736 = vmatprep.subr.mxu0 0.0
    %737 = vmatpush2.msra.mxu0 0.0
    %738 = vmatprep.subr.mxu0 0.0
    %739 = vmatpush2.msra.mxu0 0.0
    %740 = vmatprep.subr.mxu0 0.0
    %741 = vmatpush2.msra.mxu0 0.0
    %742 = vmatprep.subr.mxu0 0.0
    %743 = vmatpush2.msra.mxu0 0.0
    %744 = vmatprep.subr.mxu0 0.0
    %745 = vmatpush2.msra.mxu0 0.0
    %746 = vmatprep.subr.mxu0 0.0
    %747 = vmatpush2.msra.mxu0 0.0
    %748 = vmatprep.subr.mxu0 0.0
    %749 = vmatpush2.msra.mxu0 0.0
    %750 = vmatprep.subr.mxu0 0.0
    %751 = vmatpush2.msra.mxu0 0.0
    %752 = vmatprep.subr.mxu0 0.0
    %753 = vmatpush2.msra.mxu0 0.0
    %754 = vmatprep.subr.mxu0 0.0
    %755 = vmatpush2.msra.mxu0 0.0
    %756 = vmatprep.subr.mxu0 0.0
    %757 = vmatpush2.msra.mxu0 0.0
    %758 = vmatprep.mubr.f32.mxu0 0.0
    %759 = vmatmul.mubr.f32.gmra.mxu0 %v692
    %v760 = vpop.f32.mrf.mxu0
    %v761 = vadd.f32 %v689, %v760
    %v762 = vpop.f32.mrf.mxu0
    %763 = vdwg.mxu0
    %vm764 = vcmp.gt.f32.partialorder %v761, 0.0
    %v765 = vmin.f32 %v761, 0.0
    %v766 = vmul.f32 %v765, 1.442695
    %v767 = vpow.pop %v766
    %v768 = vsub.f32 %v767, 1.0
    %v769 = vsel %vm764, %v761, %v768
    %v770 = vld [vmem:[%s2] sm:$0xff]
    %v771 = vld [vmem:[%s2 + $0x8] sm:$0xff]
    %v772 = vld [vmem:[%s2 + $0x10] sm:$0x3]
    %vm773 = vcmask 654336
    %v775 = vsel %vm773, %v770, 0
    %v778 = vsel %vm773, %v771, 0
    %v781 = vsel %vm773, %v772, 0
    %v784 = vsel %vm773, %v769, 0
    %786 = vmatprep.subr.mxu0 0.0
    %787 = vmatpush1.xpose.msra.mxu0 0.0
    %788 = vmatprep.subr.mxu0 0.0
    %789 = vmatpush1.xpose.msra.mxu0 0.0
    %790 = vmatprep.subr.mxu0 0.0
    %791 = vmatpush1.xpose.msra.mxu0 0.0
    %792 = vmatprep.subr.mxu0 0.0
    %793 = vmatpush1.xpose.msra.mxu0 0.0
    %794 = vmatprep.subr.mxu0 0.0
    %795 = vmatpush1.xpose.msra.mxu0 0.0
    %796 = vmatprep.subr.mxu0 0.0
    %797 = vmatpush1.xpose.msra.mxu0 0.0
    %798 = vmatprep.subr.mxu0 0.0
    %799 = vmatpush1.xpose.msra.mxu0 0.0
    %800 = vmatprep.subr.mxu0 0.0
    %801 = vmatpush1.xpose.msra.mxu0 0.0
    %802 = vmatprep.subr.mxu0 0.0
    %803 = vmatpush1.xpose.msra.mxu0 0.0
    %804 = vmatprep.subr.mxu0 0.0
    %805 = vmatpush1.xpose.msra.mxu0 0.0
    %806 = vmatprep.subr.mxu0 0.0
    %807 = vmatpush1.xpose.msra.mxu0 0.0
    %808 = vmatprep.subr.mxu0 0.0
    %809 = vmatpush1.xpose.msra.mxu0 0.0
    %810 = vmatprep.subr.mxu0 0.0
    %811 = vmatpush1.xpose.msra.mxu0 0.0
    %812 = vmatprep.subr.mxu0 0.0
    %813 = vmatpush1.xpose.msra.mxu0 0.0
    %814 = vmatprep.subr.mxu0 0.0
    %815 = vmatpush1.xpose.msra.mxu0 0.0
    %816 = vmatprep.subr.mxu0 0.0
    %817 = vmatpush1.xpose.msra.mxu0 %v784
    %818 = vmatprep.subr.mxu0 0.0
    %819 = vmatpush2.xpose.msra.mxu0 0.0
    %820 = vmatprep.subr.mxu0 0.0
    %821 = vmatpush2.xpose.msra.mxu0 0.0
    %822 = vmatprep.subr.mxu0 0.0
    %823 = vmatpush2.xpose.msra.mxu0 0.0
    %824 = vmatprep.subr.mxu0 0.0
    %825 = vmatpush2.xpose.msra.mxu0 0.0
    %826 = vmatprep.subr.mxu0 0.0
    %827 = vmatpush2.xpose.msra.mxu0 0.0
    %828 = vmatprep.subr.mxu0 0.0
    %829 = vmatpush2.xpose.msra.mxu0 0.0
    %830 = vmatprep.subr.mxu0 0.0
    %831 = vmatpush2.xpose.msra.mxu0 0.0
    %832 = vmatprep.subr.mxu0 0.0
    %833 = vmatpush2.xpose.msra.mxu0 0.0
    %834 = vmatprep.subr.mxu0 0.0
    %835 = vmatpush2.xpose.msra.mxu0 0.0
    %836 = vmatprep.subr.mxu0 0.0
    %837 = vmatpush2.xpose.msra.mxu0 0.0
    %838 = vmatprep.subr.mxu0 0.0
    %839 = vmatpush2.xpose.msra.mxu0 0.0
    %840 = vmatprep.subr.mxu0 0.0
    %841 = vmatpush2.xpose.msra.mxu0 0.0
    %842 = vmatprep.subr.mxu0 0.0
    %843 = vmatpush2.xpose.msra.mxu0 0.0
    %844 = vmatprep.subr.mxu0 0.0
    %845 = vmatpush2.xpose.msra.mxu0 0.0
    %846 = vmatprep.subr.mxu0 0.0
    %847 = vmatpush2.xpose.msra.mxu0 0.0
    %848 = vmatprep.subr.mxu0 0.0
    %849 = vmatpush2.xpose.msra.mxu0 0.0
    %850 = vmatprep.mubr.f32.mxu0 0.0
    %851 = vmatmul.mubr.f32.gmra.mxu0 %v775
    %v852 = vpop.f32.mrf.mxu0
    %v853 = vadd.f32 0.0, %v852
    %v854 = vpop.f32.mrf.mxu0
    %855 = vmatprep.mubr.f32.mxu0 0.0
    %856 = vmatmul.mubr.f32.gmra.mxu0 %v778
    %v857 = vpop.f32.mrf.mxu0
    %v858 = vadd.f32 0.0, %v857
    %v859 = vpop.f32.mrf.mxu0
    %860 = vmatprep.mubr.f32.mxu0 0.0
    %861 = vmatmul.mubr.f32.gmra.mxu0 %v781
    %v862 = vpop.f32.mrf.mxu0
    %v863 = vadd.f32 0.0, %v862
    %v864 = vpop.f32.mrf.mxu0
    %865 = vdwg.mxu0
    %vm868 = vcmask 1041408
    %v869 = vrot.slane %v853, 6
    %v870 = vrot.slane %v858, 6
    %v871 = vsel %vm868, %v869, %v870
    %872 = vrot.lane.b32.xlu0 %v871, 8
    %v873 = vpop.permute.xlu0 %872
    %vm876 = vcmask 1043456
    %v877 = vrot.slane %v858, 4
    %v878 = vrot.slane %v863, 4
    %v879 = vsel %vm876, %v877, %v878
    %880 = vrot.lane.b32.xlu0 %v879, 16
    %v881 = vpop.permute.xlu0 %880
    %v883 = vsel %vm67, %v853, %v873
    %vm884 = vcmask 130048
    %v885 = vsel %vm884, %v883, %v881
    %v886 = vld [vmem:[%s2 + $0x18] sm:$0xff]
    %v887 = vld [vmem:[%s2 + $0x20] sm:$0xff]
    %v888 = vld [vmem:[%s2 + $0x28] sm:$0xff]
    %v889 = vld [vmem:[%s2 + $0xa0] sm:$0x1]
    %v890 = vlaneseq
    %v891 = vshrl.u32 %v890, 7
    %v892 = vsub.s32 0, %v891
    %v893 = vrot.slane %v889, %v892
    %vm894 = vcmask 195584
    %v896 = vsel %vm894, %v885, 0
    %898 = vmatprep.subr.mxu0 0.0
    %899 = vmatpush1.msra.mxu0 0.0
    %900 = vmatprep.subr.mxu0 0.0
    %901 = vmatpush1.msra.mxu0 0.0
    %902 = vmatprep.subr.mxu0 0.0
    %903 = vmatpush1.msra.mxu0 0.0
    %904 = vmatprep.subr.mxu0 0.0
    %905 = vmatpush1.msra.mxu0 0.0
    %906 = vmatprep.subr.mxu0 0.0
    %907 = vmatpush1.msra.mxu0 0.0
    %908 = vmatprep.subr.mxu0 0.0
    %909 = vmatpush1.msra.mxu0 0.0
    %910 = vmatprep.subr.mxu0 0.0
    %911 = vmatpush1.msra.mxu0 0.0
    %912 = vmatprep.subr.mxu0 0.0
    %913 = vmatpush1.msra.mxu0 0.0
    %914 = vmatprep.subr.mxu0 0.0
    %915 = vmatpush1.msra.mxu0 0.0
    %916 = vmatprep.subr.mxu0 0.0
    %917 = vmatpush1.msra.mxu0 0.0
    %918 = vmatprep.subr.mxu0 0.0
    %919 = vmatpush1.msra.mxu0 0.0
    %920 = vmatprep.subr.mxu0 0.0
    %921 = vmatpush1.msra.mxu0 0.0
    %922 = vmatprep.subr.mxu0 0.0
    %923 = vmatpush1.msra.mxu0 0.0
    %924 = vmatprep.subr.mxu0 0.0
    %925 = vmatpush1.msra.mxu0 %v888
    %926 = vmatprep.subr.mxu0 0.0
    %927 = vmatpush1.msra.mxu0 %v887
    %928 = vmatprep.subr.mxu0 0.0
    %929 = vmatpush1.msra.mxu0 %v886
    %930 = vmatprep.subr.mxu0 0.0
    %931 = vmatpush2.msra.mxu0 0.0
    %932 = vmatprep.subr.mxu0 0.0
    %933 = vmatpush2.msra.mxu0 0.0
    %934 = vmatprep.subr.mxu0 0.0
    %935 = vmatpush2.msra.mxu0 0.0
    %936 = vmatprep.subr.mxu0 0.0
    %937 = vmatpush2.msra.mxu0 0.0
    %938 = vmatprep.subr.mxu0 0.0
    %939 = vmatpush2.msra.mxu0 0.0
    %940 = vmatprep.subr.mxu0 0.0
    %941 = vmatpush2.msra.mxu0 0.0
    %942 = vmatprep.subr.mxu0 0.0
    %943 = vmatpush2.msra.mxu0 0.0
    %944 = vmatprep.subr.mxu0 0.0
    %945 = vmatpush2.msra.mxu0 0.0
    %946 = vmatprep.subr.mxu0 0.0
    %947 = vmatpush2.msra.mxu0 0.0
    %948 = vmatprep.subr.mxu0 0.0
    %949 = vmatpush2.msra.mxu0 0.0
    %950 = vmatprep.subr.mxu0 0.0
    %951 = vmatpush2.msra.mxu0 0.0
    %952 = vmatprep.subr.mxu0 0.0
    %953 = vmatpush2.msra.mxu0 0.0
    %954 = vmatprep.subr.mxu0 0.0
    %955 = vmatpush2.msra.mxu0 0.0
    %956 = vmatprep.subr.mxu0 0.0
    %957 = vmatpush2.msra.mxu0 0.0
    %958 = vmatprep.subr.mxu0 0.0
    %959 = vmatpush2.msra.mxu0 0.0
    %960 = vmatprep.subr.mxu0 0.0
    %961 = vmatpush2.msra.mxu0 0.0
    %962 = vmatprep.mubr.f32.mxu0 0.0
    %963 = vmatmul.mubr.f32.gmra.mxu0 %v896
    %v964 = vpop.f32.mrf.mxu0
    %v965 = vadd.f32 %v893, %v964
    %v966 = vpop.f32.mrf.mxu0
    %967 = vdwg.mxu0
    %v968 = vmax.f32 %v965, 0.0
    %v969 = vld [vmem:[%s2 + $0x30] sm:$0xff]
    %v970 = vld [vmem:[%s2 + $0x38] sm:$0xff]
    %v971 = vld [vmem:[%s2 + $0x40] sm:$0xff]
    %v972 = vld [vmem:[%s2 + $0xa8] sm:$0x1]
    %v973 = vlaneseq
    %v974 = vshrl.u32 %v973, 7
    %v975 = vsub.s32 0, %v974
    %v976 = vrot.slane %v972, %v975
    %v978 = vsel %vm894, %v968, 0
    %980 = vmatprep.subr.mxu0 0.0
    %981 = vmatpush1.msra.mxu0 0.0
    %982 = vmatprep.subr.mxu0 0.0
    %983 = vmatpush1.msra.mxu0 0.0
    %984 = vmatprep.subr.mxu0 0.0
    %985 = vmatpush1.msra.mxu0 0.0
    %986 = vmatprep.subr.mxu0 0.0
    %987 = vmatpush1.msra.mxu0 0.0
    %988 = vmatprep.subr.mxu0 0.0
    %989 = vmatpush1.msra.mxu0 0.0
    %990 = vmatprep.subr.mxu0 0.0
    %991 = vmatpush1.msra.mxu0 0.0
    %992 = vmatprep.subr.mxu0 0.0
    %993 = vmatpush1.msra.mxu0 0.0
    %994 = vmatprep.subr.mxu0 0.0
    %995 = vmatpush1.msra.mxu0 0.0
    %996 = vmatprep.subr.mxu0 0.0
    %997 = vmatpush1.msra.mxu0 0.0
    %998 = vmatprep.subr.mxu0 0.0
    %999 = vmatpush1.msra.mxu0 0.0
    %1000 = vmatprep.subr.mxu0 0.0
    %1001 = vmatpush1.msra.mxu0 0.0
    %1002 = vmatprep.subr.mxu0 0.0
    %1003 = vmatpush1.msra.mxu0 0.0
    %1004 = vmatprep.subr.mxu0 0.0
    %1005 = vmatpush1.msra.mxu0 0.0
    %1006 = vmatprep.subr.mxu0 0.0
    %1007 = vmatpush1.msra.mxu0 %v971
    %1008 = vmatprep.subr.mxu0 0.0
    %1009 = vmatpush1.msra.mxu0 %v970
    %1010 = vmatprep.subr.mxu0 0.0
    %1011 = vmatpush1.msra.mxu0 %v969
    %1012 = vmatprep.subr.mxu0 0.0
    %1013 = vmatpush2.msra.mxu0 0.0
    %1014 = vmatprep.subr.mxu0 0.0
    %1015 = vmatpush2.msra.mxu0 0.0
    %1016 = vmatprep.subr.mxu0 0.0
    %1017 = vmatpush2.msra.mxu0 0.0
    %1018 = vmatprep.subr.mxu0 0.0
    %1019 = vmatpush2.msra.mxu0 0.0
    %1020 = vmatprep.subr.mxu0 0.0
    %1021 = vmatpush2.msra.mxu0 0.0
    %1022 = vmatprep.subr.mxu0 0.0
    %1023 = vmatpush2.msra.mxu0 0.0
    %1024 = vmatprep.subr.mxu0 0.0
    %1025 = vmatpush2.msra.mxu0 0.0
    %1026 = vmatprep.subr.mxu0 0.0
    %1027 = vmatpush2.msra.mxu0 0.0
    %1028 = vmatprep.subr.mxu0 0.0
    %1029 = vmatpush2.msra.mxu0 0.0
    %1030 = vmatprep.subr.mxu0 0.0
    %1031 = vmatpush2.msra.mxu0 0.0
    %1032 = vmatprep.subr.mxu0 0.0
    %1033 = vmatpush2.msra.mxu0 0.0
    %1034 = vmatprep.subr.mxu0 0.0
    %1035 = vmatpush2.msra.mxu0 0.0
    %1036 = vmatprep.subr.mxu0 0.0
    %1037 = vmatpush2.msra.mxu0 0.0
    %1038 = vmatprep.subr.mxu0 0.0
    %1039 = vmatpush2.msra.mxu0 0.0
    %1040 = vmatprep.subr.mxu0 0.0
    %1041 = vmatpush2.msra.mxu0 0.0
    %1042 = vmatprep.subr.mxu0 0.0
    %1043 = vmatpush2.msra.mxu0 0.0
    %1044 = vmatprep.mubr.f32.mxu0 0.0
    %1045 = vmatmul.mubr.f32.gmra.mxu0 %v978
    %v1046 = vpop.f32.mrf.mxu0
    %v1047 = vadd.f32 %v976, %v1046
    %v1048 = vpop.f32.mrf.mxu0
    %1049 = vdwg.mxu0
    %v1050 = vmax.f32 %v1047, 0.0
    %v1051 = vadd.f32 %v1050, %v885
    %v1052 = vmax.f32 %v1051, 0.0
    %v1053 = vld [vmem:[%s2 + $0x48] sm:$0xff]
    %v1054 = vld [vmem:[%s2 + $0x50] sm:$0xff]
    %v1055 = vld [vmem:[%s2 + $0x58] sm:$0xff]
    %v1056 = vld [vmem:[%s2 + $0xb0] sm:$0x1]
    %v1057 = vlaneseq
    %v1058 = vshrl.u32 %v1057, 7
    %v1059 = vsub.s32 0, %v1058
    %v1060 = vrot.slane %v1056, %v1059
    %v1062 = vsel %vm894, %v1052, 0
    %1064 = vmatprep.subr.mxu0 0.0
    %1065 = vmatpush1.msra.mxu0 0.0
    %1066 = vmatprep.subr.mxu0 0.0
    %1067 = vmatpush1.msra.mxu0 0.0
    %1068 = vmatprep.subr.mxu0 0.0
    %1069 = vmatpush1.msra.mxu0 0.0
    %1070 = vmatprep.subr.mxu0 0.0
    %1071 = vmatpush1.msra.mxu0 0.0
    %1072 = vmatprep.subr.mxu0 0.0
    %1073 = vmatpush1.msra.mxu0 0.0
    %1074 = vmatprep.subr.mxu0 0.0
    %1075 = vmatpush1.msra.mxu0 0.0
    %1076 = vmatprep.subr.mxu0 0.0
    %1077 = vmatpush1.msra.mxu0 0.0
    %1078 = vmatprep.subr.mxu0 0.0
    %1079 = vmatpush1.msra.mxu0 0.0
    %1080 = vmatprep.subr.mxu0 0.0
    %1081 = vmatpush1.msra.mxu0 0.0
    %1082 = vmatprep.subr.mxu0 0.0
    %1083 = vmatpush1.msra.mxu0 0.0
    %1084 = vmatprep.subr.mxu0 0.0
    %1085 = vmatpush1.msra.mxu0 0.0
    %1086 = vmatprep.subr.mxu0 0.0
    %1087 = vmatpush1.msra.mxu0 0.0
    %1088 = vmatprep.subr.mxu0 0.0
    %1089 = vmatpush1.msra.mxu0 0.0
    %1090 = vmatprep.subr.mxu0 0.0
    %1091 = vmatpush1.msra.mxu0 %v1055
    %1092 = vmatprep.subr.mxu0 0.0
    %1093 = vmatpush1.msra.mxu0 %v1054
    %1094 = vmatprep.subr.mxu0 0.0
    %1095 = vmatpush1.msra.mxu0 %v1053
    %1096 = vmatprep.subr.mxu0 0.0
    %1097 = vmatpush2.msra.mxu0 0.0
    %1098 = vmatprep.subr.mxu0 0.0
    %1099 = vmatpush2.msra.mxu0 0.0
    %1100 = vmatprep.subr.mxu0 0.0
    %1101 = vmatpush2.msra.mxu0 0.0
    %1102 = vmatprep.subr.mxu0 0.0
    %1103 = vmatpush2.msra.mxu0 0.0
    %1104 = vmatprep.subr.mxu0 0.0
    %1105 = vmatpush2.msra.mxu0 0.0
    %1106 = vmatprep.subr.mxu0 0.0
    %1107 = vmatpush2.msra.mxu0 0.0
    %1108 = vmatprep.subr.mxu0 0.0
    %1109 = vmatpush2.msra.mxu0 0.0
    %1110 = vmatprep.subr.mxu0 0.0
    %1111 = vmatpush2.msra.mxu0 0.0
    %1112 = vmatprep.subr.mxu0 0.0
    %1113 = vmatpush2.msra.mxu0 0.0
    %1114 = vmatprep.subr.mxu0 0.0
    %1115 = vmatpush2.msra.mxu0 0.0
    %1116 = vmatprep.subr.mxu0 0.0
    %1117 = vmatpush2.msra.mxu0 0.0
    %1118 = vmatprep.subr.mxu0 0.0
    %1119 = vmatpush2.msra.mxu0 0.0
    %1120 = vmatprep.subr.mxu0 0.0
    %1121 = vmatpush2.msra.mxu0 0.0
    %1122 = vmatprep.subr.mxu0 0.0
    %1123 = vmatpush2.msra.mxu0 0.0
    %1124 = vmatprep.subr.mxu0 0.0
    %1125 = vmatpush2.msra.mxu0 0.0
    %1126 = vmatprep.subr.mxu0 0.0
    %1127 = vmatpush2.msra.mxu0 0.0
    %1128 = vmatprep.mubr.f32.mxu0 0.0
    %1129 = vmatmul.mubr.f32.gmra.mxu0 %v1062
    %v1130 = vpop.f32.mrf.mxu0
    %v1131 = vadd.f32 %v1060, %v1130
    %v1132 = vpop.f32.mrf.mxu0
    %1133 = vdwg.mxu0
    %v1134 = vmax.f32 %v1131, 0.0
    %v1135 = vld [vmem:[%s2 + $0x60] sm:$0xff]
    %v1136 = vld [vmem:[%s2 + $0x68] sm:$0xff]
    %v1137 = vld [vmem:[%s2 + $0x70] sm:$0xff]
    %v1138 = vld [vmem:[%s2 + $0xb8] sm:$0x1]
    %v1139 = vlaneseq
    %v1140 = vshrl.u32 %v1139, 7
    %v1141 = vsub.s32 0, %v1140
    %v1142 = vrot.slane %v1138, %v1141
    %v1144 = vsel %vm894, %v1134, 0
    %1146 = vmatprep.subr.mxu0 0.0
    %1147 = vmatpush1.msra.mxu0 0.0
    %1148 = vmatprep.subr.mxu0 0.0
    %1149 = vmatpush1.msra.mxu0 0.0
    %1150 = vmatprep.subr.mxu0 0.0
    %1151 = vmatpush1.msra.mxu0 0.0
    %1152 = vmatprep.subr.mxu0 0.0
    %1153 = vmatpush1.msra.mxu0 0.0
    %1154 = vmatprep.subr.mxu0 0.0
    %1155 = vmatpush1.msra.mxu0 0.0
    %1156 = vmatprep.subr.mxu0 0.0
    %1157 = vmatpush1.msra.mxu0 0.0
    %1158 = vmatprep.subr.mxu0 0.0
    %1159 = vmatpush1.msra.mxu0 0.0
    %1160 = vmatprep.subr.mxu0 0.0
    %1161 = vmatpush1.msra.mxu0 0.0
    %1162 = vmatprep.subr.mxu0 0.0
    %1163 = vmatpush1.msra.mxu0 0.0
    %1164 = vmatprep.subr.mxu0 0.0
    %1165 = vmatpush1.msra.mxu0 0.0
    %1166 = vmatprep.subr.mxu0 0.0
    %1167 = vmatpush1.msra.mxu0 0.0
    %1168 = vmatprep.subr.mxu0 0.0
    %1169 = vmatpush1.msra.mxu0 0.0
    %1170 = vmatprep.subr.mxu0 0.0
    %1171 = vmatpush1.msra.mxu0 0.0
    %1172 = vmatprep.subr.mxu0 0.0
    %1173 = vmatpush1.msra.mxu0 %v1137
    %1174 = vmatprep.subr.mxu0 0.0
    %1175 = vmatpush1.msra.mxu0 %v1136
    %1176 = vmatprep.subr.mxu0 0.0
    %1177 = vmatpush1.msra.mxu0 %v1135
    %1178 = vmatprep.subr.mxu0 0.0
    %1179 = vmatpush2.msra.mxu0 0.0
    %1180 = vmatprep.subr.mxu0 0.0
    %1181 = vmatpush2.msra.mxu0 0.0
    %1182 = vmatprep.subr.mxu0 0.0
    %1183 = vmatpush2.msra.mxu0 0.0
    %1184 = vmatprep.subr.mxu0 0.0
    %1185 = vmatpush2.msra.mxu0 0.0
    %1186 = vmatprep.subr.mxu0 0.0
    %1187 = vmatpush2.msra.mxu0 0.0
    %1188 = vmatprep.subr.mxu0 0.0
    %1189 = vmatpush2.msra.mxu0 0.0
    %1190 = vmatprep.subr.mxu0 0.0
    %1191 = vmatpush2.msra.mxu0 0.0
    %1192 = vmatprep.subr.mxu0 0.0
    %1193 = vmatpush2.msra.mxu0 0.0
    %1194 = vmatprep.subr.mxu0 0.0
    %1195 = vmatpush2.msra.mxu0 0.0
    %1196 = vmatprep.subr.mxu0 0.0
    %1197 = vmatpush2.msra.mxu0 0.0
    %1198 = vmatprep.subr.mxu0 0.0
    %1199 = vmatpush2.msra.mxu0 0.0
    %1200 = vmatprep.subr.mxu0 0.0
    %1201 = vmatpush2.msra.mxu0 0.0
    %1202 = vmatprep.subr.mxu0 0.0
    %1203 = vmatpush2.msra.mxu0 0.0
    %1204 = vmatprep.subr.mxu0 0.0
    %1205 = vmatpush2.msra.mxu0 0.0
    %1206 = vmatprep.subr.mxu0 0.0
    %1207 = vmatpush2.msra.mxu0 0.0
    %1208 = vmatprep.subr.mxu0 0.0
    %1209 = vmatpush2.msra.mxu0 0.0
    %1210 = vmatprep.mubr.f32.mxu0 0.0
    %1211 = vmatmul.mubr.f32.gmra.mxu0 %v1144
    %v1212 = vpop.f32.mrf.mxu0
    %v1213 = vadd.f32 %v1142, %v1212
    %v1214 = vpop.f32.mrf.mxu0
    %1215 = vdwg.mxu0
    %v1216 = vmax.f32 %v1213, 0.0
    %v1217 = vld [vmem:[%s2 + $0xc8] sm:$0x3]
    %vm1218 = vcmask 48128
    %v1220 = vsel %vm1218, %v1217, 0
    %vm1222 = vcmask 1045504
    %v1224 = vsel %vm1222, %v1216, 0
    %1226 = vmatprep.subr.mxu0 0.0
    %1227 = vmatpush1.msra.mxu0 0.0
    %1228 = vmatprep.subr.mxu0 0.0
    %1229 = vmatpush1.msra.mxu0 0.0
    %1230 = vmatprep.subr.mxu0 0.0
    %1231 = vmatpush1.msra.mxu0 0.0
    %1232 = vmatprep.subr.mxu0 0.0
    %1233 = vmatpush1.msra.mxu0 0.0
    %1234 = vmatprep.subr.mxu0 0.0
    %1235 = vmatpush1.msra.mxu0 0.0
    %1236 = vmatprep.subr.mxu0 0.0
    %1237 = vmatpush1.msra.mxu0 0.0
    %1238 = vmatprep.subr.mxu0 0.0
    %1239 = vmatpush1.msra.mxu0 0.0
    %1240 = vmatprep.subr.mxu0 0.0
    %1241 = vmatpush1.msra.mxu0 0.0
    %1242 = vmatprep.subr.mxu0 0.0
    %1243 = vmatpush1.msra.mxu0 0.0
    %1244 = vmatprep.subr.mxu0 0.0
    %1245 = vmatpush1.msra.mxu0 0.0
    %1246 = vmatprep.subr.mxu0 0.0
    %1247 = vmatpush1.msra.mxu0 0.0
    %1248 = vmatprep.subr.mxu0 0.0
    %1249 = vmatpush1.msra.mxu0 0.0
    %1250 = vmatprep.subr.mxu0 0.0
    %1251 = vmatpush1.msra.mxu0 0.0
    %1252 = vmatprep.subr.mxu0 0.0
    %1253 = vmatpush1.msra.mxu0 0.0
    %1254 = vmatprep.subr.mxu0 0.0
    %1255 = vmatpush1.msra.mxu0 0.0
    %1256 = vmatprep.subr.mxu0 0.0
    %1257 = vmatpush1.msra.mxu0 %v1224
    %1258 = vmatprep.subr.mxu0 0.0
    %1259 = vmatpush2.msra.mxu0 0.0
    %1260 = vmatprep.subr.mxu0 0.0
    %1261 = vmatpush2.msra.mxu0 0.0
    %1262 = vmatprep.subr.mxu0 0.0
    %1263 = vmatpush2.msra.mxu0 0.0
    %1264 = vmatprep.subr.mxu0 0.0
    %1265 = vmatpush2.msra.mxu0 0.0
    %1266 = vmatprep.subr.mxu0 0.0
    %1267 = vmatpush2.msra.mxu0 0.0
    %1268 = vmatprep.subr.mxu0 0.0
    %1269 = vmatpush2.msra.mxu0 0.0
    %1270 = vmatprep.subr.mxu0 0.0
    %1271 = vmatpush2.msra.mxu0 0.0
    %1272 = vmatprep.subr.mxu0 0.0
    %1273 = vmatpush2.msra.mxu0 0.0
    %1274 = vmatprep.subr.mxu0 0.0
    %1275 = vmatpush2.msra.mxu0 0.0
    %1276 = vmatprep.subr.mxu0 0.0
    %1277 = vmatpush2.msra.mxu0 0.0
    %1278 = vmatprep.subr.mxu0 0.0
    %1279 = vmatpush2.msra.mxu0 0.0
    %1280 = vmatprep.subr.mxu0 0.0
    %1281 = vmatpush2.msra.mxu0 0.0
    %1282 = vmatprep.subr.mxu0 0.0
    %1283 = vmatpush2.msra.mxu0 0.0
    %1284 = vmatprep.subr.mxu0 0.0
    %1285 = vmatpush2.msra.mxu0 0.0
    %1286 = vmatprep.subr.mxu0 0.0
    %1287 = vmatpush2.msra.mxu0 0.0
    %1288 = vmatprep.subr.mxu0 0.0
    %1289 = vmatpush2.msra.mxu0 0.0
    %1290 = vmatprep.mubr.f32.mxu0 0.0
    %1291 = vmatmul.mubr.f32.gmra.mxu0 %v1220
    %v1292 = vpop.f32.mrf.mxu0
    %v1293 = vadd.f32 0.0, %v1292
    %v1294 = vpop.f32.mrf.mxu0
    %1295 = vdwg.mxu0
    %v1296 = vld [vmem:[%s2 + $0x98] sm:$0xff]
    %v1297 = vld [vmem:[%s2 + $0xc0] sm:$0x1]
    %v1298 = vlaneseq
    %v1299 = vshrl.u32 %v1298, 7
    %v1300 = vsub.s32 0, %v1299
    %v1301 = vrot.slane %v1297, %v1300
    %v1303 = vsel %vm67, %v1293, 0
    %1305 = vmatprep.subr.mxu0 0.0
    %1306 = vmatpush1.msra.mxu0 0.0
    %1307 = vmatprep.subr.mxu0 0.0
    %1308 = vmatpush1.msra.mxu0 0.0
    %1309 = vmatprep.subr.mxu0 0.0
    %1310 = vmatpush1.msra.mxu0 0.0
    %1311 = vmatprep.subr.mxu0 0.0
    %1312 = vmatpush1.msra.mxu0 0.0
    %1313 = vmatprep.subr.mxu0 0.0
    %1314 = vmatpush1.msra.mxu0 0.0
    %1315 = vmatprep.subr.mxu0 0.0
    %1316 = vmatpush1.msra.mxu0 0.0
    %1317 = vmatprep.subr.mxu0 0.0
    %1318 = vmatpush1.msra.mxu0 0.0
    %1319 = vmatprep.subr.mxu0 0.0
    %1320 = vmatpush1.msra.mxu0 0.0
    %1321 = vmatprep.subr.mxu0 0.0
    %1322 = vmatpush1.msra.mxu0 0.0
    %1323 = vmatprep.subr.mxu0 0.0
    %1324 = vmatpush1.msra.mxu0 0.0
    %1325 = vmatprep.subr.mxu0 0.0
    %1326 = vmatpush1.msra.mxu0 0.0
    %1327 = vmatprep.subr.mxu0 0.0
    %1328 = vmatpush1.msra.mxu0 0.0
    %1329 = vmatprep.subr.mxu0 0.0
    %1330 = vmatpush1.msra.mxu0 0.0
    %1331 = vmatprep.subr.mxu0 0.0
    %1332 = vmatpush1.msra.mxu0 0.0
    %1333 = vmatprep.subr.mxu0 0.0
    %1334 = vmatpush1.msra.mxu0 0.0
    %1335 = vmatprep.subr.mxu0 0.0
    %1336 = vmatpush1.msra.mxu0 %v1296
    %1337 = vmatprep.subr.mxu0 0.0
    %1338 = vmatpush2.msra.mxu0 0.0
    %1339 = vmatprep.subr.mxu0 0.0
    %1340 = vmatpush2.msra.mxu0 0.0
    %1341 = vmatprep.subr.mxu0 0.0
    %1342 = vmatpush2.msra.mxu0 0.0
    %1343 = vmatprep.subr.mxu0 0.0
    %1344 = vmatpush2.msra.mxu0 0.0
    %1345 = vmatprep.subr.mxu0 0.0
    %1346 = vmatpush2.msra.mxu0 0.0
    %1347 = vmatprep.subr.mxu0 0.0
    %1348 = vmatpush2.msra.mxu0 0.0
    %1349 = vmatprep.subr.mxu0 0.0
    %1350 = vmatpush2.msra.mxu0 0.0
    %1351 = vmatprep.subr.mxu0 0.0
    %1352 = vmatpush2.msra.mxu0 0.0
    %1353 = vmatprep.subr.mxu0 0.0
    %1354 = vmatpush2.msra.mxu0 0.0
    %1355 = vmatprep.subr.mxu0 0.0
    %1356 = vmatpush2.msra.mxu0 0.0
    %1357 = vmatprep.subr.mxu0 0.0
    %1358 = vmatpush2.msra.mxu0 0.0
    %1359 = vmatprep.subr.mxu0 0.0
    %1360 = vmatpush2.msra.mxu0 0.0
    %1361 = vmatprep.subr.mxu0 0.0
    %1362 = vmatpush2.msra.mxu0 0.0
    %1363 = vmatprep.subr.mxu0 0.0
    %1364 = vmatpush2.msra.mxu0 0.0
    %1365 = vmatprep.subr.mxu0 0.0
    %1366 = vmatpush2.msra.mxu0 0.0
    %1367 = vmatprep.subr.mxu0 0.0
    %1368 = vmatpush2.msra.mxu0 0.0
    %1369 = vmatprep.mubr.f32.mxu0 0.0
    %1370 = vmatmul.mubr.f32.gmra.mxu0 %v1303
    %v1371 = vpop.f32.mrf.mxu0
    %v1372 = vadd.f32 %v1301, %v1371
    %v1373 = vpop.f32.mrf.mxu0
    %1374 = vdwg.mxu0
    %vm1375 = vcmask 25600
    %v1376 = vsel %vm1375, %v1372, -inf
    %1377 = vmax.xlane.f32.xlu0 %v1376
    %v1378 = vpop.xlane.xlu0 %1377
    %v1379 = vsub.f32 %v1372, %v1378
    %v1380 = vmul.f32 %v1379, 1.442695
    %v1381 = vpow.pop %v1380
    %v1382 = vsel %vm1375, %v1381, 0.0
    %1383 = vadd.xlane.f32.xlu0 %v1382
    %v1384 = vpop.xlane.xlu0 %1383
    %v1385 = vrcp.pop %v1384
    %v1386 = vmul.f32 %v1381, %v1385
    %1387 = vst.msk [vmem:[#allocation2] sm:$0x3] %vm1375, %v1386
    // Predicated region
    $region14: #{atcnet_forward_pallas.1} parent=1 // pred_check
      _
    $region15: #{atcnet_forward_pallas.1} parent=1 // pred_check_branch
      %1389 = sbr.rel (0) target = $region17
    $region16: #{atcnet_forward_pallas.1} parent=1 // pred_region
      %s1391 = ssub.s32 32, 32
      %1392 = vsyncadd [#allocation3], %s1391
      %s1394 = sshll.u32 [#allocation2], 4
      %s1395 = int_to_ptr.vmem [resolvable:$true] %s1394
      %1397 = dma.vmem_to_hbm [thread:$0]  %s1395, 32, %s3, [#allocation3]
    $region17: #{atcnet_forward_pallas.1} parent=1 // pred_fallthru
      _
    // Predicated region
    $region18: #{atcnet_forward_pallas.1} parent=1 // pred_check
      _
    $region19: #{atcnet_forward_pallas.1} parent=1 // pred_check_branch
      %1399 = sbr.rel (0) target = $region21
    $region20: #{atcnet_forward_pallas.1} parent=1 // pred_region
      %1400 = dma.done [#allocation3], 32
    $region21: #{atcnet_forward_pallas.1} parent=1 // pred_fallthru
      _
    %1401 = vsyncpa [#allocation3], 1

</llo_original>
